<compile_context>
chip_gen: v7x
topology: tpu7x:2x2x1
jax: 0.10.0
libtpu: 0.0.40
codegen_flags: <defaults>
</compile_context>

<pallas_src>
import numpy as np
import jax
import jax.numpy as jnp
from jax.experimental import pallas as pl
from jax.experimental.pallas import tpu as pltpu


# ----------------------------------------------------------------------------
# Model config (small shapes): tensor_size=(2,1,16,16),
# embedding_layers=[(3,8,2),(3,16,2)], n_latent=32, activation='relu',
# decoder_final_activation='tanh', pad=True, bias=False.
# ----------------------------------------------------------------------------
BATCH, IN_CH, HW = 2, 1, 16
EMB = [(3, 8, 2), (3, 16, 2)]
N_LATENT = 32
H1_C, H1_HW = EMB[0][1], HW // 2                 # 8 channels, 8x8
H1_FLAT = H1_C * H1_HW * H1_HW                   # 512
FEAT_C, FEAT_HW = EMB[-1][1], HW // 4            # 16 channels, 4x4
FEAT_FLAT = FEAT_C * FEAT_HW * FEAT_HW           # 256
IN_FLAT = IN_CH * HW * HW                        # 256


# ----------------------------------------------------------------------------
# The single fused Pallas kernel: encoder -> heads -> reparam+KLD -> decoder
# -> MSE.  Only plain 2-D dots, elementwise ops and full reductions, so it
# lowers cleanly; everything lives in VMEM for the whole invocation.
# ----------------------------------------------------------------------------
def _vae_forward_kernel(x_ref, eps_ref, enc1_ref, enc2_ref, mlv_ref, dlin_ref,
                        dec1_ref, dec2_ref,
                        enc_out_ref, mu_ref, logvar_ref, latent_ref,
                        dec_out_ref, kld_ref, mse_ref):
    f32 = jnp.float32
    x = x_ref[...]                                                   # (B, 256) NCHW-flat

    # ---- encoder: Conv(3x3, s=2, pad=1, relu) x2 (dense-operator form) ----
    h1 = jnp.maximum(jnp.dot(x, enc1_ref[...], preferred_element_type=f32), 0.0)    # (B, 512)
    enc = jnp.maximum(jnp.dot(h1, enc2_ref[...], preferred_element_type=f32), 0.0)   # (B, 256)
    enc_out_ref[...] = enc                                           # lane-dense (B, 256) store

    # ---- fused latent heads: [mu | log_var] in one 64-wide matmul ----
    mlv = jnp.dot(enc, mlv_ref[...], preferred_element_type=f32)     # (B, 64)
    mu = mlv[:, :N_LATENT]
    log_var = mlv[:, N_LATENT:]
    mu_ref[...] = mu
    logvar_ref[...] = log_var

    # ---- reparameterization + KLD (fused epilogue, no extra launch) ----
    std = jnp.exp(0.5 * log_var)
    latent = eps_ref[...] * std + mu
    latent_ref[...] = latent
    # kld = -0.5 * mean(1 + log_var - mu^2 - exp(log_var))  (mean over B*n_latent)
    kld_terms = 1.0 + log_var - mu * mu - jnp.exp(log_var)
    kld_ref[...] = (-0.5 * jnp.mean(kld_terms)).reshape(1, 1)

    # ---- decoder: Linear(relu) -> ConvT(relu) -> ConvT(relu) -> Tanh ----
    d = jnp.maximum(jnp.dot(latent, dlin_ref[...], preferred_element_type=f32), 0.0)  # (B, 256)
    d1 = jnp.maximum(jnp.dot(d, dec1_ref[...], preferred_element_type=f32), 0.0)      # (B, 512)
    dec = jnp.tanh(
        jnp.maximum(jnp.dot(d1, dec2_ref[...], preferred_element_type=f32), 0.0))     # (B, 256)
    dec_out_ref[...] = dec                                           # lane-dense (B, 256) store

    # ---- reconstruction MSE (fused epilogue) ----
    diff = dec - x
    mse_ref[...] = jnp.mean(diff * diff).reshape(1, 1)


def conv_vae_forward(ops, x_nchw, eps):
    B = x_nchw.shape[0]
    x_flat = x_nchw.reshape(B, IN_FLAT)          # NCHW flatten: metadata only

    vmem = pl.BlockSpec(memory_space=pltpu.MemorySpace.VMEM)
    outs = pl.pallas_call(
        _vae_forward_kernel,
        out_shape=(
            jax.ShapeDtypeStruct((B, FEAT_FLAT), jnp.float32),   # encoded (flat NCHW)
            jax.ShapeDtypeStruct((B, N_LATENT), jnp.float32),    # mu
            jax.ShapeDtypeStruct((B, N_LATENT), jnp.float32),    # log_var
            jax.ShapeDtypeStruct((B, N_LATENT), jnp.float32),    # latent
            jax.ShapeDtypeStruct((B, IN_FLAT), jnp.float32),     # decoded (flat NCHW)
            jax.ShapeDtypeStruct((1, 1), jnp.float32),           # kld
            jax.ShapeDtypeStruct((1, 1), jnp.float32),           # mse
        ),
        in_specs=[vmem] * 8,          # whole-array VMEM blocks, no grid needed
        out_specs=(vmem,) * 7,
    )(x_flat, eps, ops["enc1"], ops["enc2"], ops["w_mu_logvar"],
      ops["w_dec_lin"], ops["dec1"], ops["dec2"])

    enc_flat, mu, log_var, latent, dec_flat, kld, mse = outs
    encoded = enc_flat.reshape(B, FEAT_C, FEAT_HW, FEAT_HW)      # free reshape
    decoded = dec_flat.reshape(B, IN_CH, HW, HW)                 # free reshape
    return encoded, mu, log_var, latent, decoded, kld[0, 0], mse[0, 0]


# ----------------------------------------------------------------------------
# One-time host-side weight prep: lower each conv / conv-transpose layer to an
# exact dense operator A with flatNCHW(layer(x)) = flatNCHW(x) @ A (no bias).
# Done once outside the jitted forward, so the hot path has zero XLA glue.
# ----------------------------------------------------------------------------
def _conv2d_as_matrix(w_oihw, H, W, stride, pad):
    Cout, Cin, f, _ = w_oihw.shape
    Ho = (H + 2 * pad - f) // stride + 1
    Wo = (W + 2 * pad - f) // stride + 1
    A = np.zeros((Cin * H * W, Cout * Ho * Wo), np.float32)
    ci = np.arange(Cin) * H * W
    co = np.arange(Cout) * Ho * Wo
    for oh in range(Ho):
        for ow in range(Wo):
            for ki in range(f):
                for kj in range(f):
                    ih = oh * stride - pad + ki
                    iw = ow * stride - pad + kj
                    if 0 <= ih < H and 0 <= iw < W:
                        A[np.ix_(ci + ih * W + iw, co + oh * Wo + ow)] += \
                            w_oihw[:, :, ki, kj].T          # (Cin, Cout) block
    return A


def _conv_transpose2d_as_matrix(w_iohw, H, W, stride, pad, out_pad):
    Cin, Cout, f, _ = w_iohw.shape
    Ho = (H - 1) * stride - 2 * pad + f + out_pad
    Wo = (W - 1) * stride - 2 * pad + f + out_pad
    A = np.zeros((Cin * H * W, Cout * Ho * Wo), np.float32)
    ci = np.arange(Cin) * H * W
    co = np.arange(Cout) * Ho * Wo
    for ih in range(H):
        for iw in range(W):
            for ki in range(f):
                for kj in range(f):
                    oh = ih * stride - pad + ki
                    ow = iw * stride - pad + kj
                    if 0 <= oh < Ho and 0 <= ow < Wo:
                        A[np.ix_(ci + ih * W + iw, co + oh * Wo + ow)] += \
                            w_iohw[:, :, ki, kj]            # (Cin, Cout) block
    return A


def init_params(key):
    ks = jax.random.split(key, 7)
    s = 0.1
    return {
        # PyTorch layouts: Conv2d (Cout,Cin,kH,kW); ConvTranspose2d (Cin,Cout,kH,kW);
        # linears stored (in_features, out_features) for direct matmul.
        "enc_w1": jax.random.normal(ks[0], (EMB[0][1], IN_CH, 3, 3), jnp.float32) * s,
        "enc_w2": jax.random.normal(ks[1], (EMB[1][1], EMB[0][1], 3, 3), jnp.float32) * s,
        "w_mu": jax.random.normal(ks[2], (FEAT_FLAT, N_LATENT), jnp.float32) * s,
        "w_logvar": jax.random.normal(ks[3], (FEAT_FLAT, N_LATENT), jnp.float32) * s,
        "w_dec_lin": jax.random.normal(ks[4], (N_LATENT, FEAT_FLAT), jnp.float32) * s,
        "dec_wt1": jax.random.normal(ks[5], (EMB[1][1], EMB[0][1], 3, 3), jnp.float32) * s,
        "dec_wt2": jax.random.normal(ks[6], (EMB[0][1], IN_CH, 3, 3), jnp.float32) * s,
    }


def build_operators(params):
    enc1 = _conv2d_as_matrix(np.asarray(params["enc_w1"]), HW, HW, stride=2, pad=1)        # (256, 512)
    enc2 = _conv2d_as_matrix(np.asarray(params["enc_w2"]), H1_HW, H1_HW, stride=2, pad=1)  # (512, 256)
    dec1 = _conv_transpose2d_as_matrix(np.asarray(params["dec_wt1"]), FEAT_HW, FEAT_HW,
                                       stride=2, pad=1, out_pad=1)                         # (256, 512)
    dec2 = _conv_transpose2d_as_matrix(np.asarray(params["dec_wt2"]), H1_HW, H1_HW,
                                       stride=2, pad=1, out_pad=1)                         # (512, 256)
    w_mlv = np.concatenate([np.asarray(params["w_mu"]),
                            np.asarray(params["w_logvar"])], axis=1)                       # (256, 64)
    return {
        "enc1": jnp.asarray(enc1),
        "enc2": jnp.asarray(enc2),
        "w_mu_logvar": jnp.asarray(w_mlv),
        "w_dec_lin": jnp.asarray(params["w_dec_lin"]),
        "dec1": jnp.asarray(dec1),
        "dec2": jnp.asarray(dec2),
    }


# ----------------------------------------------------------------------------
if __name__ == "__main__":
    key = jax.random.PRNGKey(0)
    k_x, k_eps, k_p = jax.random.split(key, 3)

    x = jax.random.normal(k_x, (BATCH, IN_CH, HW, HW), jnp.float32)
    # TODO(synk): reference draws eps with torch RNG inside forward; here it is a
    # deterministic explicit input (in-kernel pltpu.prng would change RNG semantics).
    eps = jax.random.normal(k_eps, (BATCH, N_LATENT), jnp.float32)

    params = init_params(k_p)
    ops = build_operators(params)          # one-time host-side weight prep

    fwd = jax.jit(conv_vae_forward)
    outs = jax.block_until_ready(fwd(ops, x, eps))

    encoded, mu, log_var, latent, decoded, kld, mse = outs
    assert encoded.shape == (BATCH, FEAT_C, FEAT_HW, FEAT_HW)
    assert mu.shape == (BATCH, N_LATENT) and log_var.shape == (BATCH, N_LATENT)
    assert latent.shape == (BATCH, N_LATENT)
    assert decoded.shape == (BATCH, IN_CH, HW, HW)
    assert kld.shape == () and mse.shape == ()
    assert bool(jnp.isfinite(kld)) and bool(jnp.isfinite(mse))
    print("KERNEL_OK")
</pallas_src>

<mosaic_0001>
module attributes {stable_mosaic.version = 11 : i64} {
  func.func @_vae_forward_kernel(%arg0: memref<2x256xf32, #tpu.memory_space<vmem>>, %arg1: memref<2x32xf32, #tpu.memory_space<vmem>>, %arg2: memref<256x512xf32, #tpu.memory_space<vmem>>, %arg3: memref<512x256xf32, #tpu.memory_space<vmem>>, %arg4: memref<256x64xf32, #tpu.memory_space<vmem>>, %arg5: memref<32x256xf32, #tpu.memory_space<vmem>>, %arg6: memref<256x512xf32, #tpu.memory_space<vmem>>, %arg7: memref<512x256xf32, #tpu.memory_space<vmem>>, %arg8: memref<2x256xf32, #tpu.memory_space<vmem>>, %arg9: memref<2x32xf32, #tpu.memory_space<vmem>>, %arg10: memref<2x32xf32, #tpu.memory_space<vmem>>, %arg11: memref<2x32xf32, #tpu.memory_space<vmem>>, %arg12: memref<2x256xf32, #tpu.memory_space<vmem>>, %arg13: memref<1x1xf32, #tpu.memory_space<vmem>>, %arg14: memref<1x1xf32, #tpu.memory_space<vmem>>) attributes {dimension_semantics = [], scalar_prefetch = 0 : i64, scratch_operands = 0 : i64, tpu.core_type = #tpu.core_type<tc>} {
    %c0 = arith.constant 0 : index
    %c0_0 = arith.constant 0 : index
    %0 = vector.load %arg0[%c0, %c0_0] : memref<2x256xf32, #tpu.memory_space<vmem>>, vector<2x256xf32>
    %c0_1 = arith.constant 0 : index
    %c0_2 = arith.constant 0 : index
    %1 = vector.load %arg2[%c0_1, %c0_2] : memref<256x512xf32, #tpu.memory_space<vmem>>, vector<256x512xf32>
    %cst = arith.constant dense<0.000000e+00> : vector<2x512xf32>
    %2 = tpu.matmul %0, %1, %cst {dimension_numbers = #tpu.dot_dimension_numbers<[1], [0], [0], [1], [0, 0, 1, 1], [], []>} : vector<2x256xf32>, vector<256x512xf32>, vector<2x512xf32> -> vector<2x512xf32>
    %cst_3 = arith.constant 0.000000e+00 : f32
    %3 = vector.broadcast %cst_3 : f32 to vector<2x512xf32>
    %4 = arith.maximumf %2, %3 : vector<2x512xf32>
    %c0_4 = arith.constant 0 : index
    %c0_5 = arith.constant 0 : index
    %5 = vector.load %arg3[%c0_4, %c0_5] : memref<512x256xf32, #tpu.memory_space<vmem>>, vector<512x256xf32>
    %cst_6 = arith.constant dense<0.000000e+00> : vector<2x256xf32>
    %6 = tpu.matmul %4, %5, %cst_6 {dimension_numbers = #tpu.dot_dimension_numbers<[1], [0], [0], [1], [0, 0, 1, 1], [], []>} : vector<2x512xf32>, vector<512x256xf32>, vector<2x256xf32> -> vector<2x256xf32>
    %cst_7 = arith.constant 0.000000e+00 : f32
    %7 = vector.broadcast %cst_7 : f32 to vector<2x256xf32>
    %8 = arith.maximumf %6, %7 : vector<2x256xf32>
    %c0_8 = arith.constant 0 : index
    %c0_9 = arith.constant 0 : index
    %9 = vector.load %arg8[%c0_8, %c0_9] : memref<2x256xf32, #tpu.memory_space<vmem>>, vector<2x256xf32>
    tpu.vector_store %arg8[%c0_8, %c0_9], %8 {strides = array<i32>} : memref<2x256xf32, #tpu.memory_space<vmem>>, vector<2x256xf32>,
    %c0_10 = arith.constant 0 : index
    %c0_11 = arith.constant 0 : index
    %10 = vector.load %arg4[%c0_10, %c0_11] : memref<256x64xf32, #tpu.memory_space<vmem>>, vector<256x64xf32>
    %cst_12 = arith.constant dense<0.000000e+00> : vector<2x64xf32>
    %11 = tpu.matmul %8, %10, %cst_12 {dimension_numbers = #tpu.dot_dimension_numbers<[1], [0], [0], [1], [0, 0, 1, 1], [], []>} : vector<2x256xf32>, vector<256x64xf32>, vector<2x64xf32> -> vector<2x64xf32>
    %12 = vector.extract_strided_slice %11 {offsets = [0, 0], sizes = [2, 32], strides = [1, 1]} : vector<2x64xf32> to vector<2x32xf32>
    %13 = vector.extract_strided_slice %11 {offsets = [0, 32], sizes = [2, 32], strides = [1, 1]} : vector<2x64xf32> to vector<2x32xf32>
    %c0_13 = arith.constant 0 : index
    %c0_14 = arith.constant 0 : index
    %14 = vector.load %arg9[%c0_13, %c0_14] : memref<2x32xf32, #tpu.memory_space<vmem>>, vector<2x32xf32>
    tpu.vector_store %arg9[%c0_13, %c0_14], %12 {strides = array<i32>} : memref<2x32xf32, #tpu.memory_space<vmem>>, vector<2x32xf32>,
    %c0_15 = arith.constant 0 : index
    %c0_16 = arith.constant 0 : index
    %15 = vector.load %arg10[%c0_15, %c0_16] : memref<2x32xf32, #tpu.memory_space<vmem>>, vector<2x32xf32>
    tpu.vector_store %arg10[%c0_15, %c0_16], %13 {strides = array<i32>} : memref<2x32xf32, #tpu.memory_space<vmem>>, vector<2x32xf32>,
    %cst_17 = arith.constant 5.000000e-01 : f32
    %16 = vector.broadcast %cst_17 : f32 to vector<2x32xf32>
    %17 = arith.mulf %16, %13 : vector<2x32xf32>
    %18 = math.exp %17 : vector<2x32xf32>
    %c0_18 = arith.constant 0 : index
    %c0_19 = arith.constant 0 : index
    %19 = vector.load %arg1[%c0_18, %c0_19] : memref<2x32xf32, #tpu.memory_space<vmem>>, vector<2x32xf32>
    %20 = arith.mulf %19, %18 : vector<2x32xf32>
    %21 = arith.addf %20, %12 : vector<2x32xf32>
    %c0_20 = arith.constant 0 : index
    %c0_21 = arith.constant 0 : index
    %22 = vector.load %arg11[%c0_20, %c0_21] : memref<2x32xf32, #tpu.memory_space<vmem>>, vector<2x32xf32>
    tpu.vector_store %arg11[%c0_20, %c0_21], %21 {strides = array<i32>} : memref<2x32xf32, #tpu.memory_space<vmem>>, vector<2x32xf32>,
    %cst_22 = arith.constant 1.000000e+00 : f32
    %23 = vector.broadcast %cst_22 : f32 to vector<2x32xf32>
    %24 = arith.addf %23, %13 : vector<2x32xf32>
    %25 = arith.mulf %12, %12 : vector<2x32xf32>
    %26 = arith.subf %24, %25 : vector<2x32xf32>
    %27 = math.exp %13 : vector<2x32xf32>
    %28 = arith.subf %26, %27 : vector<2x32xf32>
    %29 = vector.shape_cast %28 : vector<2x32xf32> to vector<1x2x32xf32>
    %cst_23 = arith.constant dense<0.000000e+00> : vector<1xf32>
    %30 = vector.multi_reduction <add>, %29, %cst_23 [1, 2] : vector<1x2x32xf32> to vector<1xf32>
    %31 = vector.shape_cast %30 : vector<1xf32> to vector<1x1x1xf32>
    %32 = vector.extract %31[0, 0, 0] : f32 from vector<1x1x1xf32>
    %cst_24 = arith.constant 6.400000e+01 : f32
    %33 = arith.divf %32, %cst_24 : f32
    %cst_25 = arith.constant -5.000000e-01 : f32
    %34 = arith.mulf %cst_25, %33 : f32
    %35 = vector.broadcast %34 : f32 to vector<1x1xf32>
    %c0_26 = arith.constant 0 : index
    %c0_27 = arith.constant 0 : index
    %36 = vector.load %arg13[%c0_26, %c0_27] : memref<1x1xf32, #tpu.memory_space<vmem>>, vector<1x1xf32>
    tpu.vector_store %arg13[%c0_26, %c0_27], %35 {strides = array<i32>} : memref<1x1xf32, #tpu.memory_space<vmem>>, vector<1x1xf32>,
    %c0_28 = arith.constant 0 : index
    %c0_29 = arith.constant 0 : index
    %37 = vector.load %arg5[%c0_28, %c0_29] : memref<32x256xf32, #tpu.memory_space<vmem>>, vector<32x256xf32>
    %cst_30 = arith.constant dense<0.000000e+00> : vector<2x256xf32>
    %38 = tpu.matmul %21, %37, %cst_30 {dimension_numbers = #tpu.dot_dimension_numbers<[1], [0], [0], [1], [0, 0, 1, 1], [], []>} : vector<2x32xf32>, vector<32x256xf32>, vector<2x256xf32> -> vector<2x256xf32>
    %cst_31 = arith.constant 0.000000e+00 : f32
    %39 = vector.broadcast %cst_31 : f32 to vector<2x256xf32>
    %40 = arith.maximumf %38, %39 : vector<2x256xf32>
    %c0_32 = arith.constant 0 : index
    %c0_33 = arith.constant 0 : index
    %41 = vector.load %arg6[%c0_32, %c0_33] : memref<256x512xf32, #tpu.memory_space<vmem>>, vector<256x512xf32>
    %cst_34 = arith.constant dense<0.000000e+00> : vector<2x512xf32>
    %42 = tpu.matmul %40, %41, %cst_34 {dimension_numbers = #tpu.dot_dimension_numbers<[1], [0], [0], [1], [0, 0, 1, 1], [], []>} : vector<2x256xf32>, vector<256x512xf32>, vector<2x512xf32> -> vector<2x512xf32>
    %cst_35 = arith.constant 0.000000e+00 : f32
    %43 = vector.broadcast %cst_35 : f32 to vector<2x512xf32>
    %44 = arith.maximumf %42, %43 : vector<2x512xf32>
    %c0_36 = arith.constant 0 : index
    %c0_37 = arith.constant 0 : index
    %45 = vector.load %arg7[%c0_36, %c0_37] : memref<512x256xf32, #tpu.memory_space<vmem>>, vector<512x256xf32>
    %cst_38 = arith.constant dense<0.000000e+00> : vector<2x256xf32>
    %46 = tpu.matmul %44, %45, %cst_38 {dimension_numbers = #tpu.dot_dimension_numbers<[1], [0], [0], [1], [0, 0, 1, 1], [], []>} : vector<2x512xf32>, vector<512x256xf32>, vector<2x256xf32> -> vector<2x256xf32>
    %cst_39 = arith.constant 0.000000e+00 : f32
    %47 = vector.broadcast %cst_39 : f32 to vector<2x256xf32>
    %48 = arith.maximumf %46, %47 : vector<2x256xf32>
    %49 = math.tanh %48 : vector<2x256xf32>
    %c0_40 = arith.constant 0 : index
    %c0_41 = arith.constant 0 : index
    %50 = vector.load %arg12[%c0_40, %c0_41] : memref<2x256xf32, #tpu.memory_space<vmem>>, vector<2x256xf32>
    tpu.vector_store %arg12[%c0_40, %c0_41], %49 {strides = array<i32>} : memref<2x256xf32, #tpu.memory_space<vmem>>, vector<2x256xf32>,
    %51 = arith.subf %49, %0 : vector<2x256xf32>
    %52 = arith.mulf %51, %51 : vector<2x256xf32>
    %53 = vector.shape_cast %52 : vector<2x256xf32> to vector<1x2x256xf32>
    %cst_42 = arith.constant dense<0.000000e+00> : vector<1xf32>
    %54 = vector.multi_reduction <add>, %53, %cst_42 [1, 2] : vector<1x2x256xf32> to vector<1xf32>
    %55 = vector.shape_cast %54 : vector<1xf32> to vector<1x1x1xf32>
    %56 = vector.extract %55[0, 0, 0] : f32 from vector<1x1x1xf32>
    %cst_43 = arith.constant 5.120000e+02 : f32
    %57 = arith.divf %56, %cst_43 : f32
    %58 = vector.broadcast %57 : f32 to vector<1x1xf32>
    %c0_44 = arith.constant 0 : index
    %c0_45 = arith.constant 0 : index
    %59 = vector.load %arg14[%c0_44, %c0_45] : memref<1x1xf32, #tpu.memory_space<vmem>>, vector<1x1xf32>
    tpu.vector_store %arg14[%c0_44, %c0_45], %58 {strides = array<i32>} : memref<1x1xf32, #tpu.memory_space<vmem>>, vector<1x1xf32>,
    return
  }
}

</mosaic_0001>

<llo_original>
// kernel: conv_vae_forward.1
$region0: #{conv_vae_forward.1}
  #allocation0 [shape = 'u32[]', space=smem, size = 0x4, offset = 0x4, fixed_abs, tag = 'smem constant byte address 0x4 - core index']
  #allocation1 [shape = 'u32[144,128]{1,0:T(1,128)}', space=vmem, size = 0x12000, scoped, tag = 'internal scratch']
  %s0 = inlined_call_operand.vmem [shape: f32[2,256], index: 0, kind: input, shape index: {}]
  %s1 = inlined_call_operand.vmem [shape: f32[2,32], index: 1, kind: input, shape index: {}]
  %s2 = inlined_call_operand.hbm [shape: f32[256,512], index: 2, kind: input, shape index: {}]
  %s3 = inlined_call_operand.hbm [shape: f32[512,256], index: 3, kind: input, shape index: {}]
  %s4 = inlined_call_operand.vmem [shape: f32[256,64], index: 4, kind: input, shape index: {}]
  %s5 = inlined_call_operand.vmem [shape: f32[32,256], index: 5, kind: input, shape index: {}]
  %s6 = inlined_call_operand.hbm [shape: f32[256,512], index: 6, kind: input, shape index: {}]
  %s7 = inlined_call_operand.hbm [shape: f32[512,256], index: 7, kind: input, shape index: {}]
  %s8 = inlined_call_operand.vmem [shape: f32[2,256], index: 8, kind: output, shape index: {0}]
  %s9 = inlined_call_operand.hbm [shape: f32[2,32], index: 9, kind: output, shape index: {1}]
  %s10 = inlined_call_operand.hbm [shape: f32[2,32], index: 10, kind: output, shape index: {2}]
  %s11 = inlined_call_operand.hbm [shape: f32[2,32], index: 11, kind: output, shape index: {3}]
  %s12 = inlined_call_operand.vmem [shape: f32[2,256], index: 12, kind: output, shape index: {4}]
  %s13 = inlined_call_operand.hbm [shape: f32[1,1], index: 13, kind: output, shape index: {5}]
  %s14 = inlined_call_operand.hbm [shape: f32[1,1], index: 14, kind: output, shape index: {6}]
  %15 = xla_tuple %s8, %s9, %s10, %s11, %s12, %s13, %s14
  %s16 = sld [smem:[#allocation0]]
  $region106: #{conv_vae_forward.1} parent=0
    _
  %s18 = ssub.s32 1, %s16
  %s19 = scalar_select 0, %s18, %s16
  $region1: #{conv_vae_forward.1} parent=0
    #allocation2 [shape = 'u8[524288]{0}', space=vmem, size = 0x80000, scoped, tag = 'input window, operand 2, single buffered']
    #allocation3 [shape = 's32[1]{0}', space=sflag, size = 0x4, scoped, tag = 'scoped memory for conv_vae_forward.1']
    #allocation4 [shape = 's32[1]{0}', space=sflag, size = 0x4, scoped, tag = 'scoped memory for conv_vae_forward.1']
    #allocation5 [shape = 'u8[524288]{0}', space=vmem, size = 0x80000, scoped, tag = 'input window, operand 3, single buffered']
    #allocation6 [shape = 's32[1]{0}', space=sflag, size = 0x4, scoped, tag = 'scoped memory for conv_vae_forward.1']
    #allocation7 [shape = 'u8[524288]{0}', space=vmem, size = 0x80000, scoped, tag = 'input window, operand 6, single buffered']
    #allocation8 [shape = 'u8[524288]{0}', space=vmem, size = 0x80000, scoped, tag = 'input window, operand 7, single buffered']
    #allocation9 [shape = 's32[1]{0}', space=sflag, size = 0x4, scoped, tag = 'scoped memory for conv_vae_forward.1']
    #allocation10 [shape = 'u8[1024]{0}', space=vmem, size = 0x400, scoped, tag = 'output window, operand 1, single buffered']
    #allocation11 [shape = 'u8[1024]{0}', space=vmem, size = 0x400, scoped, tag = 'output window, operand 2, single buffered']
    #allocation12 [shape = 's32[1]{0}', space=sflag, size = 0x4, scoped, tag = 'scoped memory for conv_vae_forward.1']
    #allocation13 [shape = 'u8[1024]{0}', space=vmem, size = 0x400, scoped, tag = 'output window, operand 3, single buffered']
    #allocation14 [shape = 'u8[512]{0}', space=vmem, size = 0x400, scoped, tag = 'output window, operand 5, single buffered']
    #allocation15 [shape = 's32[1]{0}', space=sflag, size = 0x4, scoped, tag = 'scoped memory for conv_vae_forward.1']
    #allocation16 [shape = 'u8[512]{0}', space=vmem, size = 0x400, scoped, tag = 'output window, operand 6, single buffered']
    %20 = vsyncpa [#allocation3], 0
    %21 = vsyncpa [#allocation6], 0
    %22 = vsyncpa [#allocation9], 0
    %23 = vsyncpa [#allocation4], 0
    %24 = vsyncpa [#allocation12], 0
    %25 = vsyncpa [#allocation15], 0
    // Predicated region
    $region2: #{conv_vae_forward.1} parent=1 // pred_check
      _
    $region3: #{conv_vae_forward.1} parent=1 // pred_check_branch
      %27 = sbr.rel (0) target = $region5
    $region4: #{conv_vae_forward.1} parent=1 // pred_region
      _
    $region5: #{conv_vae_forward.1} parent=1 // pred_fallthru
      _
    // Predicated region
    $region6: #{conv_vae_forward.1} parent=1 // pred_check
      _
    $region7: #{conv_vae_forward.1} parent=1 // pred_check_branch
      %29 = sbr.rel (0) target = $region9
    $region8: #{conv_vae_forward.1} parent=1 // pred_region
      _
    $region9: #{conv_vae_forward.1} parent=1 // pred_fallthru
      _
    // Predicated region
    $region10: #{conv_vae_forward.1} parent=1 // pred_check
      _
    $region11: #{conv_vae_forward.1} parent=1 // pred_check_branch
      %31 = sbr.rel (0) target = $region13
    $region12: #{conv_vae_forward.1} parent=1 // pred_region
      %s33 = ssub.s32 16384, 16384
      %34 = vsyncadd [#allocation3], %s33
      %s35 = sshll.u32 [#allocation2], 4
      %s36 = int_to_ptr.vmem [resolvable:$true] %s35
      %41 = dma.hbm_to_vmem [thread:$0]  %s2, 16384, %s36, [#allocation3], 512, 512, 32
    $region13: #{conv_vae_forward.1} parent=1 // pred_fallthru
      _
    // Predicated region
    $region14: #{conv_vae_forward.1} parent=1 // pred_check
      _
    $region15: #{conv_vae_forward.1} parent=1 // pred_check_branch
      %43 = sbr.rel (0) target = $region17
    $region16: #{conv_vae_forward.1} parent=1 // pred_region
      %s45 = ssub.s32 16384, 16384
      %46 = vsyncadd [#allocation6], %s45
      %s47 = sshll.u32 [#allocation5], 4
      %s48 = int_to_ptr.vmem [resolvable:$true] %s47
      %53 = dma.hbm_to_vmem [thread:$0]  %s3, 16384, %s48, [#allocation6], 256, 256, 16
    $region17: #{conv_vae_forward.1} parent=1 // pred_fallthru
      _
    // Predicated region
    $region18: #{conv_vae_forward.1} parent=1 // pred_check
      _
    $region19: #{conv_vae_forward.1} parent=1 // pred_check_branch
      %55 = sbr.rel (0) target = $region21
    $region20: #{conv_vae_forward.1} parent=1 // pred_region
      _
    $region21: #{conv_vae_forward.1} parent=1 // pred_fallthru
      _
    // Predicated region
    $region22: #{conv_vae_forward.1} parent=1 // pred_check
      _
    $region23: #{conv_vae_forward.1} parent=1 // pred_check_branch
      %57 = sbr.rel (0) target = $region25
    $region24: #{conv_vae_forward.1} parent=1 // pred_region
      _
    $region25: #{conv_vae_forward.1} parent=1 // pred_fallthru
      _
    // Predicated region
    $region26: #{conv_vae_forward.1} parent=1 // pred_check
      _
    $region27: #{conv_vae_forward.1} parent=1 // pred_check_branch
      %59 = sbr.rel (0) target = $region29
    $region28: #{conv_vae_forward.1} parent=1 // pred_region
      %s61 = ssub.s32 16384, 16384
      %62 = vsyncadd [#allocation6], %s61
      %s63 = sshll.u32 [#allocation7], 4
      %s64 = int_to_ptr.vmem [resolvable:$true] %s63
      %69 = dma.hbm_to_vmem [thread:$0]  %s6, 16384, %s64, [#allocation6], 512, 512, 32
    $region29: #{conv_vae_forward.1} parent=1 // pred_fallthru
      _
    // Predicated region
    $region30: #{conv_vae_forward.1} parent=1 // pred_check
      _
    $region31: #{conv_vae_forward.1} parent=1 // pred_check_branch
      %71 = sbr.rel (0) target = $region33
    $region32: #{conv_vae_forward.1} parent=1 // pred_region
      %s73 = ssub.s32 16384, 16384
      %74 = vsyncadd [#allocation9], %s73
      %s75 = sshll.u32 [#allocation8], 4
      %s76 = int_to_ptr.vmem [resolvable:$true] %s75
      %81 = dma.hbm_to_vmem [thread:$0]  %s7, 16384, %s76, [#allocation9], 256, 256, 16
    $region33: #{conv_vae_forward.1} parent=1 // pred_fallthru
      _
    // Predicated region
    $region34: #{conv_vae_forward.1} parent=1 // pred_check
      _
    $region35: #{conv_vae_forward.1} parent=1 // pred_check_branch
      %83 = sbr.rel (0) target = $region37
    $region36: #{conv_vae_forward.1} parent=1 // pred_region
      %84 = dma.done [#allocation3], 16384
    $region37: #{conv_vae_forward.1} parent=1 // pred_fallthru
      _
    // Predicated region
    $region38: #{conv_vae_forward.1} parent=1 // pred_check
      _
    $region39: #{conv_vae_forward.1} parent=1 // pred_check_branch
      %86 = sbr.rel (0) target = $region41
    $region40: #{conv_vae_forward.1} parent=1 // pred_region
      %87 = dma.done [#allocation6], 16384
    $region41: #{conv_vae_forward.1} parent=1 // pred_fallthru
      _
    // Predicated region
    $region42: #{conv_vae_forward.1} parent=1 // pred_check
      _
    $region43: #{conv_vae_forward.1} parent=1 // pred_check_branch
      %89 = sbr.rel (0) target = $region45
    $region44: #{conv_vae_forward.1} parent=1 // pred_region
      %90 = dma.done [#allocation6], 16384
    $region45: #{conv_vae_forward.1} parent=1 // pred_fallthru
      _
    // Predicated region
    $region46: #{conv_vae_forward.1} parent=1 // pred_check
      _
    $region47: #{conv_vae_forward.1} parent=1 // pred_check_branch
      %92 = sbr.rel (0) target = $region49
    $region48: #{conv_vae_forward.1} parent=1 // pred_region
      %93 = dma.done [#allocation9], 16384
    $region49: #{conv_vae_forward.1} parent=1 // pred_fallthru
      _
    %v94 = vld [vmem:[%s0] sm:$0xf]
    %v95 = vld [vmem:[#allocation2] sm:$0xff]
    %v96 = vld [vmem:[#allocation2 + $0x8] sm:$0xff]
    %v97 = vld [vmem:[#allocation2 + $0x10] sm:$0xff]
    %v98 = vld [vmem:[#allocation2 + $0x18] sm:$0xff]
    %v99 = vld [vmem:[#allocation2 + $0x20] sm:$0xff]
    %v100 = vld [vmem:[#allocation2 + $0x28] sm:$0xff]
    %v101 = vld [vmem:[#allocation2 + $0x30] sm:$0xff]
    %v102 = vld [vmem:[#allocation2 + $0x38] sm:$0xff]
    %v103 = vld [vmem:[#allocation2 + $0x40] sm:$0xff]
    %v104 = vld [vmem:[#allocation2 + $0x48] sm:$0xff]
    %v105 = vld [vmem:[#allocation2 + $0x50] sm:$0xff]
    %v106 = vld [vmem:[#allocation2 + $0x58] sm:$0xff]
    %v107 = vld [vmem:[#allocation2 + $0x60] sm:$0xff]
    %v108 = vld [vmem:[#allocation2 + $0x68] sm:$0xff]
    %v109 = vld [vmem:[#allocation2 + $0x70] sm:$0xff]
    %v110 = vld [vmem:[#allocation2 + $0x78] sm:$0xff]
    %v111 = vld [vmem:[#allocation2 + $0x80] sm:$0xff]
    %v112 = vld [vmem:[#allocation2 + $0x88] sm:$0xff]
    %v113 = vld [vmem:[#allocation2 + $0x90] sm:$0xff]
    %v114 = vld [vmem:[#allocation2 + $0x98] sm:$0xff]
    %v115 = vld [vmem:[#allocation2 + $0xa0] sm:$0xff]
    %v116 = vld [vmem:[#allocation2 + $0xa8] sm:$0xff]
    %v117 = vld [vmem:[#allocation2 + $0xb0] sm:$0xff]
    %v118 = vld [vmem:[#allocation2 + $0xb8] sm:$0xff]
    %v119 = vld [vmem:[#allocation2 + $0xc0] sm:$0xff]
    %v120 = vld [vmem:[#allocation2 + $0xc8] sm:$0xff]
    %v121 = vld [vmem:[#allocation2 + $0xd0] sm:$0xff]
    %v122 = vld [vmem:[#allocation2 + $0xd8] sm:$0xff]
    %v123 = vld [vmem:[#allocation2 + $0xe0] sm:$0xff]
    %v124 = vld [vmem:[#allocation2 + $0xe8] sm:$0xff]
    %v125 = vld [vmem:[#allocation2 + $0xf0] sm:$0xff]
    %v126 = vld [vmem:[#allocation2 + $0xf8] sm:$0xff]
    %v127 = vld [vmem:[#allocation2 + $0x100] sm:$0xff]
    %v128 = vld [vmem:[#allocation2 + $0x108] sm:$0xff]
    %v129 = vld [vmem:[#allocation2 + $0x110] sm:$0xff]
    %v130 = vld [vmem:[#allocation2 + $0x118] sm:$0xff]
    %v131 = vld [vmem:[#allocation2 + $0x120] sm:$0xff]
    %v132 = vld [vmem:[#allocation2 + $0x128] sm:$0xff]
    %v133 = vld [vmem:[#allocation2 + $0x130] sm:$0xff]
    %v134 = vld [vmem:[#allocation2 + $0x138] sm:$0xff]
    %v135 = vld [vmem:[#allocation2 + $0x140] sm:$0xff]
    %v136 = vld [vmem:[#allocation2 + $0x148] sm:$0xff]
    %v137 = vld [vmem:[#allocation2 + $0x150] sm:$0xff]
    %v138 = vld [vmem:[#allocation2 + $0x158] sm:$0xff]
    %v139 = vld [vmem:[#allocation2 + $0x160] sm:$0xff]
    %v140 = vld [vmem:[#allocation2 + $0x168] sm:$0xff]
    %v141 = vld [vmem:[#allocation2 + $0x170] sm:$0xff]
    %v142 = vld [vmem:[#allocation2 + $0x178] sm:$0xff]
    %v143 = vld [vmem:[#allocation2 + $0x180] sm:$0xff]
    %v144 = vld [vmem:[#allocation2 + $0x188] sm:$0xff]
    %v145 = vld [vmem:[#allocation2 + $0x190] sm:$0xff]
    %v146 = vld [vmem:[#allocation2 + $0x198] sm:$0xff]
    %v147 = vld [vmem:[#allocation2 + $0x1a0] sm:$0xff]
    %v148 = vld [vmem:[#allocation2 + $0x1a8] sm:$0xff]
    %v149 = vld [vmem:[#allocation2 + $0x1b0] sm:$0xff]
    %v150 = vld [vmem:[#allocation2 + $0x1b8] sm:$0xff]
    %v151 = vld [vmem:[#allocation2 + $0x1c0] sm:$0xff]
    %v152 = vld [vmem:[#allocation2 + $0x1c8] sm:$0xff]
    %v153 = vld [vmem:[#allocation2 + $0x1d0] sm:$0xff]
    %v154 = vld [vmem:[#allocation2 + $0x1d8] sm:$0xff]
    %v155 = vld [vmem:[#allocation2 + $0x1e0] sm:$0xff]
    %v156 = vld [vmem:[#allocation2 + $0x1e8] sm:$0xff]
    %v157 = vld [vmem:[#allocation2 + $0x1f0] sm:$0xff]
    %v158 = vld [vmem:[#allocation2 + $0x1f8] sm:$0xff]
    %v159 = vld [vmem:[#allocation2 + $0x200] sm:$0xff]
    %v160 = vld [vmem:[#allocation2 + $0x208] sm:$0xff]
    %v161 = vld [vmem:[#allocation2 + $0x210] sm:$0xff]
    %v162 = vld [vmem:[#allocation2 + $0x218] sm:$0xff]
    %v163 = vld [vmem:[#allocation2 + $0x220] sm:$0xff]
    %v164 = vld [vmem:[#allocation2 + $0x228] sm:$0xff]
    %v165 = vld [vmem:[#allocation2 + $0x230] sm:$0xff]
    %v166 = vld [vmem:[#allocation2 + $0x238] sm:$0xff]
    %v167 = vld [vmem:[#allocation2 + $0x240] sm:$0xff]
    %v168 = vld [vmem:[#allocation2 + $0x248] sm:$0xff]
    %v169 = vld [vmem:[#allocation2 + $0x250] sm:$0xff]
    %v170 = vld [vmem:[#allocation2 + $0x258] sm:$0xff]
    %v171 = vld [vmem:[#allocation2 + $0x260] sm:$0xff]
    %v172 = vld [vmem:[#allocation2 + $0x268] sm:$0xff]
    %v173 = vld [vmem:[#allocation2 + $0x270] sm:$0xff]
    %v174 = vld [vmem:[#allocation2 + $0x278] sm:$0xff]
    %v175 = vld [vmem:[#allocation2 + $0x280] sm:$0xff]
    %v176 = vld [vmem:[#allocation2 + $0x288] sm:$0xff]
    %v177 = vld [vmem:[#allocation2 + $0x290] sm:$0xff]
    %v178 = vld [vmem:[#allocation2 + $0x298] sm:$0xff]
    %v179 = vld [vmem:[#allocation2 + $0x2a0] sm:$0xff]
    %v180 = vld [vmem:[#allocation2 + $0x2a8] sm:$0xff]
    %v181 = vld [vmem:[#allocation2 + $0x2b0] sm:$0xff]
    %v182 = vld [vmem:[#allocation2 + $0x2b8] sm:$0xff]
    %v183 = vld [vmem:[#allocation2 + $0x2c0] sm:$0xff]
    %v184 = vld [vmem:[#allocation2 + $0x2c8] sm:$0xff]
    %v185 = vld [vmem:[#allocation2 + $0x2d0] sm:$0xff]
    %v186 = vld [vmem:[#allocation2 + $0x2d8] sm:$0xff]
    %v187 = vld [vmem:[#allocation2 + $0x2e0] sm:$0xff]
    %v188 = vld [vmem:[#allocation2 + $0x2e8] sm:$0xff]
    %v189 = vld [vmem:[#allocation2 + $0x2f0] sm:$0xff]
    %v190 = vld [vmem:[#allocation2 + $0x2f8] sm:$0xff]
    %v191 = vld [vmem:[#allocation2 + $0x300] sm:$0xff]
    %v192 = vld [vmem:[#allocation2 + $0x308] sm:$0xff]
    %v193 = vld [vmem:[#allocation2 + $0x310] sm:$0xff]
    %v194 = vld [vmem:[#allocation2 + $0x318] sm:$0xff]
    %v195 = vld [vmem:[#allocation2 + $0x320] sm:$0xff]
    %v196 = vld [vmem:[#allocation2 + $0x328] sm:$0xff]
    %v197 = vld [vmem:[#allocation2 + $0x330] sm:$0xff]
    %v198 = vld [vmem:[#allocation2 + $0x338] sm:$0xff]
    %v199 = vld [vmem:[#allocation2 + $0x340] sm:$0xff]
    %v200 = vld [vmem:[#allocation2 + $0x348] sm:$0xff]
    %v201 = vld [vmem:[#allocation2 + $0x350] sm:$0xff]
    %v202 = vld [vmem:[#allocation2 + $0x358] sm:$0xff]
    %v203 = vld [vmem:[#allocation2 + $0x360] sm:$0xff]
    %v204 = vld [vmem:[#allocation2 + $0x368] sm:$0xff]
    %v205 = vld [vmem:[#allocation2 + $0x370] sm:$0xff]
    %v206 = vld [vmem:[#allocation2 + $0x378] sm:$0xff]
    %v207 = vld [vmem:[#allocation2 + $0x380] sm:$0xff]
    %v208 = vld [vmem:[#allocation2 + $0x388] sm:$0xff]
    %v209 = vld [vmem:[#allocation2 + $0x390] sm:$0xff]
    %v210 = vld [vmem:[#allocation2 + $0x398] sm:$0xff]
    %v211 = vld [vmem:[#allocation2 + $0x3a0] sm:$0xff]
    %v212 = vld [vmem:[#allocation2 + $0x3a8] sm:$0xff]
    %v213 = vld [vmem:[#allocation2 + $0x3b0] sm:$0xff]
    %v214 = vld [vmem:[#allocation2 + $0x3b8] sm:$0xff]
    %v215 = vld [vmem:[#allocation2 + $0x3c0] sm:$0xff]
    %v216 = vld [vmem:[#allocation2 + $0x3c8] sm:$0xff]
    %v217 = vld [vmem:[#allocation2 + $0x3d0] sm:$0xff]
    %v218 = vld [vmem:[#allocation2 + $0x3d8] sm:$0xff]
    %v219 = vld [vmem:[#allocation2 + $0x3e0] sm:$0xff]
    %v220 = vld [vmem:[#allocation2 + $0x3e8] sm:$0xff]
    %v221 = vld [vmem:[#allocation2 + $0x3f0] sm:$0xff]
    %v222 = vld [vmem:[#allocation2 + $0x3f8] sm:$0xff]
    %v225 = vunpack.c.l.s4 1983009808
    %v226 = vunpack.c.0.s8 %v225
    %v227 = vlaneseq
    %v228 = vshrl.u32 %v227, 7
    %v229 = vsub.s32 %v226, %v228
    %v230 = vrot.slane %v94, %v229
    %v231 = vcombine.high %v230, %v230
    %234 = vmatprep.subr.mxu0 %v96
    %235 = vmatpush1.msra.mxu0 %v95
    %236 = vmatprep.subr.mxu0 %v100
    %237 = vmatpush1.msra.mxu0 %v99
    %238 = vmatprep.subr.mxu0 %v104
    %239 = vmatpush1.msra.mxu0 %v103
    %240 = vmatprep.subr.mxu0 %v108
    %241 = vmatpush1.msra.mxu0 %v107
    %242 = vmatprep.subr.mxu0 %v112
    %243 = vmatpush1.msra.mxu0 %v111
    %244 = vmatprep.subr.mxu0 %v116
    %245 = vmatpush1.msra.mxu0 %v115
    %246 = vmatprep.subr.mxu0 %v120
    %247 = vmatpush1.msra.mxu0 %v119
    %248 = vmatprep.subr.mxu0 %v124
    %249 = vmatpush1.msra.mxu0 %v123
    %250 = vmatprep.subr.mxu0 %v128
    %251 = vmatpush1.msra.mxu0 %v127
    %252 = vmatprep.subr.mxu0 %v132
    %253 = vmatpush1.msra.mxu0 %v131
    %254 = vmatprep.subr.mxu0 %v136
    %255 = vmatpush1.msra.mxu0 %v135
    %256 = vmatprep.subr.mxu0 %v140
    %257 = vmatpush1.msra.mxu0 %v139
    %258 = vmatprep.subr.mxu0 %v144
    %259 = vmatpush1.msra.mxu0 %v143
    %260 = vmatprep.subr.mxu0 %v148
    %261 = vmatpush1.msra.mxu0 %v147
    %262 = vmatprep.subr.mxu0 %v152
    %263 = vmatpush1.msra.mxu0 %v151
    %264 = vmatprep.subr.mxu0 %v156
    %265 = vmatpush1.msra.mxu0 %v155
    %266 = vmatprep.subr.mxu0 %v160
    %267 = vmatpush1.msra.mxu0 %v159
    %268 = vmatprep.subr.mxu0 %v164
    %269 = vmatpush1.msra.mxu0 %v163
    %270 = vmatprep.subr.mxu0 %v168
    %271 = vmatpush1.msra.mxu0 %v167
    %272 = vmatprep.subr.mxu0 %v172
    %273 = vmatpush1.msra.mxu0 %v171
    %274 = vmatprep.subr.mxu0 %v176
    %275 = vmatpush1.msra.mxu0 %v175
    %276 = vmatprep.subr.mxu0 %v180
    %277 = vmatpush1.msra.mxu0 %v179
    %278 = vmatprep.subr.mxu0 %v184
    %279 = vmatpush1.msra.mxu0 %v183
    %280 = vmatprep.subr.mxu0 %v188
    %281 = vmatpush1.msra.mxu0 %v187
    %282 = vmatprep.subr.mxu0 %v192
    %283 = vmatpush1.msra.mxu0 %v191
    %284 = vmatprep.subr.mxu0 %v196
    %285 = vmatpush1.msra.mxu0 %v195
    %286 = vmatprep.subr.mxu0 %v200
    %287 = vmatpush1.msra.mxu0 %v199
    %288 = vmatprep.subr.mxu0 %v204
    %289 = vmatpush1.msra.mxu0 %v203
    %290 = vmatprep.subr.mxu0 %v208
    %291 = vmatpush1.msra.mxu0 %v207
    %292 = vmatprep.subr.mxu0 %v212
    %293 = vmatpush1.msra.mxu0 %v211
    %294 = vmatprep.subr.mxu0 %v216
    %295 = vmatpush1.msra.mxu0 %v215
    %296 = vmatprep.subr.mxu0 %v220
    %297 = vmatpush1.msra.mxu0 %v219
    %298 = vmatprep.mubr.f32.mxu0 %v231
    %299 = vmatmul.mubr.f32.gmra.mrb[0].mxu0 %v230
    %v300 = vpop.f32.mrb[0].mxu0
    %v301 = vadd.f32 0.0, %v300
    %v302 = vpop.f32.mrb[0].mxu0
    %v303 = vadd.f32 0.0, %v302
    %304 = vdwg.mxu0
    %305 = vmatprep.subr.mxu0 %v98
    %306 = vmatpush1.msra.mxu0 %v97
    %307 = vmatprep.subr.mxu0 %v102
    %308 = vmatpush1.msra.mxu0 %v101
    %309 = vmatprep.subr.mxu0 %v106
    %310 = vmatpush1.msra.mxu0 %v105
    %311 = vmatprep.subr.mxu0 %v110
    %312 = vmatpush1.msra.mxu0 %v109
    %313 = vmatprep.subr.mxu0 %v114
    %314 = vmatpush1.msra.mxu0 %v113
    %315 = vmatprep.subr.mxu0 %v118
    %316 = vmatpush1.msra.mxu0 %v117
    %317 = vmatprep.subr.mxu0 %v122
    %318 = vmatpush1.msra.mxu0 %v121
    %319 = vmatprep.subr.mxu0 %v126
    %320 = vmatpush1.msra.mxu0 %v125
    %321 = vmatprep.subr.mxu0 %v130
    %322 = vmatpush1.msra.mxu0 %v129
    %323 = vmatprep.subr.mxu0 %v134
    %324 = vmatpush1.msra.mxu0 %v133
    %325 = vmatprep.subr.mxu0 %v138
    %326 = vmatpush1.msra.mxu0 %v137
    %327 = vmatprep.subr.mxu0 %v142
    %328 = vmatpush1.msra.mxu0 %v141
    %329 = vmatprep.subr.mxu0 %v146
    %330 = vmatpush1.msra.mxu0 %v145
    %331 = vmatprep.subr.mxu0 %v150
    %332 = vmatpush1.msra.mxu0 %v149
    %333 = vmatprep.subr.mxu0 %v154
    %334 = vmatpush1.msra.mxu0 %v153
    %335 = vmatprep.subr.mxu0 %v158
    %336 = vmatpush1.msra.mxu0 %v157
    %337 = vmatprep.subr.mxu0 %v162
    %338 = vmatpush1.msra.mxu0 %v161
    %339 = vmatprep.subr.mxu0 %v166
    %340 = vmatpush1.msra.mxu0 %v165
    %341 = vmatprep.subr.mxu0 %v170
    %342 = vmatpush1.msra.mxu0 %v169
    %343 = vmatprep.subr.mxu0 %v174
    %344 = vmatpush1.msra.mxu0 %v173
    %345 = vmatprep.subr.mxu0 %v178
    %346 = vmatpush1.msra.mxu0 %v177
    %347 = vmatprep.subr.mxu0 %v182
    %348 = vmatpush1.msra.mxu0 %v181
    %349 = vmatprep.subr.mxu0 %v186
    %350 = vmatpush1.msra.mxu0 %v185
    %351 = vmatprep.subr.mxu0 %v190
    %352 = vmatpush1.msra.mxu0 %v189
    %353 = vmatprep.subr.mxu0 %v194
    %354 = vmatpush1.msra.mxu0 %v193
    %355 = vmatprep.subr.mxu0 %v198
    %356 = vmatpush1.msra.mxu0 %v197
    %357 = vmatprep.subr.mxu0 %v202
    %358 = vmatpush1.msra.mxu0 %v201
    %359 = vmatprep.subr.mxu0 %v206
    %360 = vmatpush1.msra.mxu0 %v205
    %361 = vmatprep.subr.mxu0 %v210
    %362 = vmatpush1.msra.mxu0 %v209
    %363 = vmatprep.subr.mxu0 %v214
    %364 = vmatpush1.msra.mxu0 %v213
    %365 = vmatprep.subr.mxu0 %v218
    %366 = vmatpush1.msra.mxu0 %v217
    %367 = vmatprep.subr.mxu0 %v222
    %368 = vmatpush1.msra.mxu0 %v221
    %369 = vmatprep.mubr.f32.mxu0 %v231
    %370 = vmatmul.mubr.f32.gmra.mrb[0].mxu0 %v230
    %v371 = vpop.f32.mrb[0].mxu0
    %v372 = vadd.f32 0.0, %v371
    %v373 = vpop.f32.mrb[0].mxu0
    %v374 = vadd.f32 0.0, %v373
    %375 = vdwg.mxu0
    %v376 = vmax.f32 %v301, 0.0
    %v377 = vmax.f32 %v303, 0.0
    %v378 = vmax.f32 %v372, 0.0
    %v379 = vmax.f32 %v374, 0.0
    %v380 = vld [vmem:[#allocation5] sm:$0xff]
    %v381 = vld [vmem:[#allocation5 + $0x8] sm:$0xff]
    %v382 = vld [vmem:[#allocation5 + $0x10] sm:$0xff]
    %v383 = vld [vmem:[#allocation5 + $0x18] sm:$0xff]
    %v384 = vld [vmem:[#allocation5 + $0x20] sm:$0xff]
    %v385 = vld [vmem:[#allocation5 + $0x28] sm:$0xff]
    %v386 = vld [vmem:[#allocation5 + $0x30] sm:$0xff]
    %v387 = vld [vmem:[#allocation5 + $0x38] sm:$0xff]
    %v388 = vld [vmem:[#allocation5 + $0x40] sm:$0xff]
    %v389 = vld [vmem:[#allocation5 + $0x48] sm:$0xff]
    %v390 = vld [vmem:[#allocation5 + $0x50] sm:$0xff]
    %v391 = vld [vmem:[#allocation5 + $0x58] sm:$0xff]
    %v392 = vld [vmem:[#allocation5 + $0x60] sm:$0xff]
    %v393 = vld [vmem:[#allocation5 + $0x68] sm:$0xff]
    %v394 = vld [vmem:[#allocation5 + $0x70] sm:$0xff]
    %v395 = vld [vmem:[#allocation5 + $0x78] sm:$0xff]
    %v396 = vld [vmem:[#allocation5 + $0x80] sm:$0xff]
    %v397 = vld [vmem:[#allocation5 + $0x88] sm:$0xff]
    %v398 = vld [vmem:[#allocation5 + $0x90] sm:$0xff]
    %v399 = vld [vmem:[#allocation5 + $0x98] sm:$0xff]
    %v400 = vld [vmem:[#allocation5 + $0xa0] sm:$0xff]
    %v401 = vld [vmem:[#allocation5 + $0xa8] sm:$0xff]
    %v402 = vld [vmem:[#allocation5 + $0xb0] sm:$0xff]
    %v403 = vld [vmem:[#allocation5 + $0xb8] sm:$0xff]
    %v404 = vld [vmem:[#allocation5 + $0xc0] sm:$0xff]
    %v405 = vld [vmem:[#allocation5 + $0xc8] sm:$0xff]
    %v406 = vld [vmem:[#allocation5 + $0xd0] sm:$0xff]
    %v407 = vld [vmem:[#allocation5 + $0xd8] sm:$0xff]
    %v408 = vld [vmem:[#allocation5 + $0xe0] sm:$0xff]
    %v409 = vld [vmem:[#allocation5 + $0xe8] sm:$0xff]
    %v410 = vld [vmem:[#allocation5 + $0xf0] sm:$0xff]
    %v411 = vld [vmem:[#allocation5 + $0xf8] sm:$0xff]
    %v412 = vld [vmem:[#allocation5 + $0x100] sm:$0xff]
    %v413 = vld [vmem:[#allocation5 + $0x108] sm:$0xff]
    %v414 = vld [vmem:[#allocation5 + $0x110] sm:$0xff]
    %v415 = vld [vmem:[#allocation5 + $0x118] sm:$0xff]
    %v416 = vld [vmem:[#allocation5 + $0x120] sm:$0xff]
    %v417 = vld [vmem:[#allocation5 + $0x128] sm:$0xff]
    %v418 = vld [vmem:[#allocation5 + $0x130] sm:$0xff]
    %v419 = vld [vmem:[#allocation5 + $0x138] sm:$0xff]
    %v420 = vld [vmem:[#allocation5 + $0x140] sm:$0xff]
    %v421 = vld [vmem:[#allocation5 + $0x148] sm:$0xff]
    %v422 = vld [vmem:[#allocation5 + $0x150] sm:$0xff]
    %v423 = vld [vmem:[#allocation5 + $0x158] sm:$0xff]
    %v424 = vld [vmem:[#allocation5 + $0x160] sm:$0xff]
    %v425 = vld [vmem:[#allocation5 + $0x168] sm:$0xff]
    %v426 = vld [vmem:[#allocation5 + $0x170] sm:$0xff]
    %v427 = vld [vmem:[#allocation5 + $0x178] sm:$0xff]
    %v428 = vld [vmem:[#allocation5 + $0x180] sm:$0xff]
    %v429 = vld [vmem:[#allocation5 + $0x188] sm:$0xff]
    %v430 = vld [vmem:[#allocation5 + $0x190] sm:$0xff]
    %v431 = vld [vmem:[#allocation5 + $0x198] sm:$0xff]
    %v432 = vld [vmem:[#allocation5 + $0x1a0] sm:$0xff]
    %v433 = vld [vmem:[#allocation5 + $0x1a8] sm:$0xff]
    %v434 = vld [vmem:[#allocation5 + $0x1b0] sm:$0xff]
    %v435 = vld [vmem:[#allocation5 + $0x1b8] sm:$0xff]
    %v436 = vld [vmem:[#allocation5 + $0x1c0] sm:$0xff]
    %v437 = vld [vmem:[#allocation5 + $0x1c8] sm:$0xff]
    %v438 = vld [vmem:[#allocation5 + $0x1d0] sm:$0xff]
    %v439 = vld [vmem:[#allocation5 + $0x1d8] sm:$0xff]
    %v440 = vld [vmem:[#allocation5 + $0x1e0] sm:$0xff]
    %v441 = vld [vmem:[#allocation5 + $0x1e8] sm:$0xff]
    %v442 = vld [vmem:[#allocation5 + $0x1f0] sm:$0xff]
    %v443 = vld [vmem:[#allocation5 + $0x1f8] sm:$0xff]
    %v444 = vld [vmem:[#allocation5 + $0x200] sm:$0xff]
    %v445 = vld [vmem:[#allocation5 + $0x208] sm:$0xff]
    %v446 = vld [vmem:[#allocation5 + $0x210] sm:$0xff]
    %v447 = vld [vmem:[#allocation5 + $0x218] sm:$0xff]
    %v448 = vld [vmem:[#allocation5 + $0x220] sm:$0xff]
    %v449 = vld [vmem:[#allocation5 + $0x228] sm:$0xff]
    %v450 = vld [vmem:[#allocation5 + $0x230] sm:$0xff]
    %v451 = vld [vmem:[#allocation5 + $0x238] sm:$0xff]
    %v452 = vld [vmem:[#allocation5 + $0x240] sm:$0xff]
    %v453 = vld [vmem:[#allocation5 + $0x248] sm:$0xff]
    %v454 = vld [vmem:[#allocation5 + $0x250] sm:$0xff]
    %v455 = vld [vmem:[#allocation5 + $0x258] sm:$0xff]
    %v456 = vld [vmem:[#allocation5 + $0x260] sm:$0xff]
    %v457 = vld [vmem:[#allocation5 + $0x268] sm:$0xff]
    %v458 = vld [vmem:[#allocation5 + $0x270] sm:$0xff]
    %v459 = vld [vmem:[#allocation5 + $0x278] sm:$0xff]
    %v460 = vld [vmem:[#allocation5 + $0x280] sm:$0xff]
    %v461 = vld [vmem:[#allocation5 + $0x288] sm:$0xff]
    %v462 = vld [vmem:[#allocation5 + $0x290] sm:$0xff]
    %v463 = vld [vmem:[#allocation5 + $0x298] sm:$0xff]
    %v464 = vld [vmem:[#allocation5 + $0x2a0] sm:$0xff]
    %v465 = vld [vmem:[#allocation5 + $0x2a8] sm:$0xff]
    %v466 = vld [vmem:[#allocation5 + $0x2b0] sm:$0xff]
    %v467 = vld [vmem:[#allocation5 + $0x2b8] sm:$0xff]
    %v468 = vld [vmem:[#allocation5 + $0x2c0] sm:$0xff]
    %v469 = vld [vmem:[#allocation5 + $0x2c8] sm:$0xff]
    %v470 = vld [vmem:[#allocation5 + $0x2d0] sm:$0xff]
    %v471 = vld [vmem:[#allocation5 + $0x2d8] sm:$0xff]
    %v472 = vld [vmem:[#allocation5 + $0x2e0] sm:$0xff]
    %v473 = vld [vmem:[#allocation5 + $0x2e8] sm:$0xff]
    %v474 = vld [vmem:[#allocation5 + $0x2f0] sm:$0xff]
    %v475 = vld [vmem:[#allocation5 + $0x2f8] sm:$0xff]
    %v476 = vld [vmem:[#allocation5 + $0x300] sm:$0xff]
    %v477 = vld [vmem:[#allocation5 + $0x308] sm:$0xff]
    %v478 = vld [vmem:[#allocation5 + $0x310] sm:$0xff]
    %v479 = vld [vmem:[#allocation5 + $0x318] sm:$0xff]
    %v480 = vld [vmem:[#allocation5 + $0x320] sm:$0xff]
    %v481 = vld [vmem:[#allocation5 + $0x328] sm:$0xff]
    %v482 = vld [vmem:[#allocation5 + $0x330] sm:$0xff]
    %v483 = vld [vmem:[#allocation5 + $0x338] sm:$0xff]
    %v484 = vld [vmem:[#allocation5 + $0x340] sm:$0xff]
    %v485 = vld [vmem:[#allocation5 + $0x348] sm:$0xff]
    %v486 = vld [vmem:[#allocation5 + $0x350] sm:$0xff]
    %v487 = vld [vmem:[#allocation5 + $0x358] sm:$0xff]
    %v488 = vld [vmem:[#allocation5 + $0x360] sm:$0xff]
    %v489 = vld [vmem:[#allocation5 + $0x368] sm:$0xff]
    %v490 = vld [vmem:[#allocation5 + $0x370] sm:$0xff]
    %v491 = vld [vmem:[#allocation5 + $0x378] sm:$0xff]
    %v492 = vld [vmem:[#allocation5 + $0x380] sm:$0xff]
    %v493 = vld [vmem:[#allocation5 + $0x388] sm:$0xff]
    %v494 = vld [vmem:[#allocation5 + $0x390] sm:$0xff]
    %v495 = vld [vmem:[#allocation5 + $0x398] sm:$0xff]
    %v496 = vld [vmem:[#allocation5 + $0x3a0] sm:$0xff]
    %v497 = vld [vmem:[#allocation5 + $0x3a8] sm:$0xff]
    %v498 = vld [vmem:[#allocation5 + $0x3b0] sm:$0xff]
    %v499 = vld [vmem:[#allocation5 + $0x3b8] sm:$0xff]
    %v500 = vld [vmem:[#allocation5 + $0x3c0] sm:$0xff]
    %v501 = vld [vmem:[#allocation5 + $0x3c8] sm:$0xff]
    %v502 = vld [vmem:[#allocation5 + $0x3d0] sm:$0xff]
    %v503 = vld [vmem:[#allocation5 + $0x3d8] sm:$0xff]
    %v504 = vld [vmem:[#allocation5 + $0x3e0] sm:$0xff]
    %v505 = vld [vmem:[#allocation5 + $0x3e8] sm:$0xff]
    %v506 = vld [vmem:[#allocation5 + $0x3f0] sm:$0xff]
    %v507 = vld [vmem:[#allocation5 + $0x3f8] sm:$0xff]
    %508 = vmatprep.subr.mxu0 %v381
    %509 = vmatpush1.msra.mxu0 %v380
    %510 = vmatprep.subr.mxu0 %v383
    %511 = vmatpush1.msra.mxu0 %v382
    %512 = vmatprep.subr.mxu0 %v385
    %513 = vmatpush1.msra.mxu0 %v384
    %514 = vmatprep.subr.mxu0 %v387
    %515 = vmatpush1.msra.mxu0 %v386
    %516 = vmatprep.subr.mxu0 %v389
    %517 = vmatpush1.msra.mxu0 %v388
    %518 = vmatprep.subr.mxu0 %v391
    %519 = vmatpush1.msra.mxu0 %v390
    %520 = vmatprep.subr.mxu0 %v393
    %521 = vmatpush1.msra.mxu0 %v392
    %522 = vmatprep.subr.mxu0 %v395
    %523 = vmatpush1.msra.mxu0 %v394
    %524 = vmatprep.subr.mxu0 %v397
    %525 = vmatpush1.msra.mxu0 %v396
    %526 = vmatprep.subr.mxu0 %v399
    %527 = vmatpush1.msra.mxu0 %v398
    %528 = vmatprep.subr.mxu0 %v401
    %529 = vmatpush1.msra.mxu0 %v400
    %530 = vmatprep.subr.mxu0 %v403
    %531 = vmatpush1.msra.mxu0 %v402
    %532 = vmatprep.subr.mxu0 %v405
    %533 = vmatpush1.msra.mxu0 %v404
    %534 = vmatprep.subr.mxu0 %v407
    %535 = vmatpush1.msra.mxu0 %v406
    %536 = vmatprep.subr.mxu0 %v409
    %537 = vmatpush1.msra.mxu0 %v408
    %538 = vmatprep.subr.mxu0 %v411
    %539 = vmatpush1.msra.mxu0 %v410
    %540 = vmatprep.subr.mxu0 %v413
    %541 = vmatpush1.msra.mxu0 %v412
    %542 = vmatprep.subr.mxu0 %v415
    %543 = vmatpush1.msra.mxu0 %v414
    %544 = vmatprep.subr.mxu0 %v417
    %545 = vmatpush1.msra.mxu0 %v416
    %546 = vmatprep.subr.mxu0 %v419
    %547 = vmatpush1.msra.mxu0 %v418
    %548 = vmatprep.subr.mxu0 %v421
    %549 = vmatpush1.msra.mxu0 %v420
    %550 = vmatprep.subr.mxu0 %v423
    %551 = vmatpush1.msra.mxu0 %v422
    %552 = vmatprep.subr.mxu0 %v425
    %553 = vmatpush1.msra.mxu0 %v424
    %554 = vmatprep.subr.mxu0 %v427
    %555 = vmatpush1.msra.mxu0 %v426
    %556 = vmatprep.subr.mxu0 %v429
    %557 = vmatpush1.msra.mxu0 %v428
    %558 = vmatprep.subr.mxu0 %v431
    %559 = vmatpush1.msra.mxu0 %v430
    %560 = vmatprep.subr.mxu0 %v433
    %561 = vmatpush1.msra.mxu0 %v432
    %562 = vmatprep.subr.mxu0 %v435
    %563 = vmatpush1.msra.mxu0 %v434
    %564 = vmatprep.subr.mxu0 %v437
    %565 = vmatpush1.msra.mxu0 %v436
    %566 = vmatprep.subr.mxu0 %v439
    %567 = vmatpush1.msra.mxu0 %v438
    %568 = vmatprep.subr.mxu0 %v441
    %569 = vmatpush1.msra.mxu0 %v440
    %570 = vmatprep.subr.mxu0 %v443
    %571 = vmatpush1.msra.mxu0 %v442
    %572 = vmatprep.mubr.f32.mxu0 %v377
    %573 = vmatmul.mubr.f32.gmra.mrb[0].mxu0 %v376
    %v574 = vpop.f32.mrb[0].mxu0
    %v575 = vadd.f32 0.0, %v574
    %v576 = vpop.f32.mrb[0].mxu0
    %v577 = vadd.f32 0.0, %v576
    %578 = vdwg.mxu0
    %579 = vmatprep.subr.mxu0 %v445
    %580 = vmatpush1.msra.mxu0 %v444
    %581 = vmatprep.subr.mxu0 %v447
    %582 = vmatpush1.msra.mxu0 %v446
    %583 = vmatprep.subr.mxu0 %v449
    %584 = vmatpush1.msra.mxu0 %v448
    %585 = vmatprep.subr.mxu0 %v451
    %586 = vmatpush1.msra.mxu0 %v450
    %587 = vmatprep.subr.mxu0 %v453
    %588 = vmatpush1.msra.mxu0 %v452
    %589 = vmatprep.subr.mxu0 %v455
    %590 = vmatpush1.msra.mxu0 %v454
    %591 = vmatprep.subr.mxu0 %v457
    %592 = vmatpush1.msra.mxu0 %v456
    %593 = vmatprep.subr.mxu0 %v459
    %594 = vmatpush1.msra.mxu0 %v458
    %595 = vmatprep.subr.mxu0 %v461
    %596 = vmatpush1.msra.mxu0 %v460
    %597 = vmatprep.subr.mxu0 %v463
    %598 = vmatpush1.msra.mxu0 %v462
    %599 = vmatprep.subr.mxu0 %v465
    %600 = vmatpush1.msra.mxu0 %v464
    %601 = vmatprep.subr.mxu0 %v467
    %602 = vmatpush1.msra.mxu0 %v466
    %603 = vmatprep.subr.mxu0 %v469
    %604 = vmatpush1.msra.mxu0 %v468
    %605 = vmatprep.subr.mxu0 %v471
    %606 = vmatpush1.msra.mxu0 %v470
    %607 = vmatprep.subr.mxu0 %v473
    %608 = vmatpush1.msra.mxu0 %v472
    %609 = vmatprep.subr.mxu0 %v475
    %610 = vmatpush1.msra.mxu0 %v474
    %611 = vmatprep.subr.mxu0 %v477
    %612 = vmatpush1.msra.mxu0 %v476
    %613 = vmatprep.subr.mxu0 %v479
    %614 = vmatpush1.msra.mxu0 %v478
    %615 = vmatprep.subr.mxu0 %v481
    %616 = vmatpush1.msra.mxu0 %v480
    %617 = vmatprep.subr.mxu0 %v483
    %618 = vmatpush1.msra.mxu0 %v482
    %619 = vmatprep.subr.mxu0 %v485
    %620 = vmatpush1.msra.mxu0 %v484
    %621 = vmatprep.subr.mxu0 %v487
    %622 = vmatpush1.msra.mxu0 %v486
    %623 = vmatprep.subr.mxu0 %v489
    %624 = vmatpush1.msra.mxu0 %v488
    %625 = vmatprep.subr.mxu0 %v491
    %626 = vmatpush1.msra.mxu0 %v490
    %627 = vmatprep.subr.mxu0 %v493
    %628 = vmatpush1.msra.mxu0 %v492
    %629 = vmatprep.subr.mxu0 %v495
    %630 = vmatpush1.msra.mxu0 %v494
    %631 = vmatprep.subr.mxu0 %v497
    %632 = vmatpush1.msra.mxu0 %v496
    %633 = vmatprep.subr.mxu0 %v499
    %634 = vmatpush1.msra.mxu0 %v498
    %635 = vmatprep.subr.mxu0 %v501
    %636 = vmatpush1.msra.mxu0 %v500
    %637 = vmatprep.subr.mxu0 %v503
    %638 = vmatpush1.msra.mxu0 %v502
    %639 = vmatprep.subr.mxu0 %v505
    %640 = vmatpush1.msra.mxu0 %v504
    %641 = vmatprep.subr.mxu0 %v507
    %642 = vmatpush1.msra.mxu0 %v506
    %643 = vmatprep.mubr.f32.mxu0 %v379
    %644 = vmatmul.mubr.f32.gmra.mrb[0].mxu0 %v378
    %v645 = vpop.f32.mrb[0].mxu0
    %v646 = vadd.f32 %v575, %v645
    %v647 = vpop.f32.mrb[0].mxu0
    %v648 = vadd.f32 %v577, %v647
    %649 = vdwg.mxu0
    %v650 = vmax.f32 %v646, 0.0
    %v651 = vmax.f32 %v648, 0.0
    %v654 = vcombine.low %v650, %v651
    %v656 = vunpack.c.l.s4 1983009808
    %v657 = vunpack.c.0.s8 %v656
    %v658 = vlaneseq
    %v659 = vshrl.u32 %v658, 7
    %v660 = vsub.s32 %v657, %v659
    %v661 = vrot.slane %v654, %v660
    %663 = vst [vmem:[%s8] sm:$0xf] %v661
    %v664 = vld [vmem:[%s4] sm:$0xff]
    %v665 = vld [vmem:[%s4 + $0x8] sm:$0xff]
    %v666 = vld [vmem:[%s4 + $0x10] sm:$0xff]
    %v667 = vld [vmem:[%s4 + $0x18] sm:$0xff]
    %v668 = vld [vmem:[%s4 + $0x20] sm:$0xff]
    %v669 = vld [vmem:[%s4 + $0x28] sm:$0xff]
    %v670 = vld [vmem:[%s4 + $0x30] sm:$0xff]
    %v671 = vld [vmem:[%s4 + $0x38] sm:$0xff]
    %v672 = vld [vmem:[%s4 + $0x40] sm:$0xff]
    %v673 = vld [vmem:[%s4 + $0x48] sm:$0xff]
    %v674 = vld [vmem:[%s4 + $0x50] sm:$0xff]
    %v675 = vld [vmem:[%s4 + $0x58] sm:$0xff]
    %v676 = vld [vmem:[%s4 + $0x60] sm:$0xff]
    %v677 = vld [vmem:[%s4 + $0x68] sm:$0xff]
    %v678 = vld [vmem:[%s4 + $0x70] sm:$0xff]
    %v679 = vld [vmem:[%s4 + $0x78] sm:$0xff]
    %v680 = vld [vmem:[%s4 + $0x80] sm:$0xff]
    %v681 = vld [vmem:[%s4 + $0x88] sm:$0xff]
    %v682 = vld [vmem:[%s4 + $0x90] sm:$0xff]
    %v683 = vld [vmem:[%s4 + $0x98] sm:$0xff]
    %v684 = vld [vmem:[%s4 + $0xa0] sm:$0xff]
    %v685 = vld [vmem:[%s4 + $0xa8] sm:$0xff]
    %v686 = vld [vmem:[%s4 + $0xb0] sm:$0xff]
    %v687 = vld [vmem:[%s4 + $0xb8] sm:$0xff]
    %v688 = vld [vmem:[%s4 + $0xc0] sm:$0xff]
    %v689 = vld [vmem:[%s4 + $0xc8] sm:$0xff]
    %v690 = vld [vmem:[%s4 + $0xd0] sm:$0xff]
    %v691 = vld [vmem:[%s4 + $0xd8] sm:$0xff]
    %v692 = vld [vmem:[%s4 + $0xe0] sm:$0xff]
    %v693 = vld [vmem:[%s4 + $0xe8] sm:$0xff]
    %v694 = vld [vmem:[%s4 + $0xf0] sm:$0xff]
    %v695 = vld [vmem:[%s4 + $0xf8] sm:$0xff]
    %696 = vmatprep.subr.mxu0 0.0
    %697 = vmatpush1.msra.mxu0 %v664
    %698 = vmatprep.subr.mxu0 0.0
    %699 = vmatpush1.msra.mxu0 %v665
    %700 = vmatprep.subr.mxu0 0.0
    %701 = vmatpush1.msra.mxu0 %v666
    %702 = vmatprep.subr.mxu0 0.0
    %703 = vmatpush1.msra.mxu0 %v667
    %704 = vmatprep.subr.mxu0 0.0
    %705 = vmatpush1.msra.mxu0 %v668
    %706 = vmatprep.subr.mxu0 0.0
    %707 = vmatpush1.msra.mxu0 %v669
    %708 = vmatprep.subr.mxu0 0.0
    %709 = vmatpush1.msra.mxu0 %v670
    %710 = vmatprep.subr.mxu0 0.0
    %711 = vmatpush1.msra.mxu0 %v671
    %712 = vmatprep.subr.mxu0 0.0
    %713 = vmatpush1.msra.mxu0 %v672
    %714 = vmatprep.subr.mxu0 0.0
    %715 = vmatpush1.msra.mxu0 %v673
    %716 = vmatprep.subr.mxu0 0.0
    %717 = vmatpush1.msra.mxu0 %v674
    %718 = vmatprep.subr.mxu0 0.0
    %719 = vmatpush1.msra.mxu0 %v675
    %720 = vmatprep.subr.mxu0 0.0
    %721 = vmatpush1.msra.mxu0 %v676
    %722 = vmatprep.subr.mxu0 0.0
    %723 = vmatpush1.msra.mxu0 %v677
    %724 = vmatprep.subr.mxu0 0.0
    %725 = vmatpush1.msra.mxu0 %v678
    %726 = vmatprep.subr.mxu0 0.0
    %727 = vmatpush1.msra.mxu0 %v679
    %728 = vmatprep.subr.mxu0 0.0
    %729 = vmatpush1.msra.mxu0 %v680
    %730 = vmatprep.subr.mxu0 0.0
    %731 = vmatpush1.msra.mxu0 %v681
    %732 = vmatprep.subr.mxu0 0.0
    %733 = vmatpush1.msra.mxu0 %v682
    %734 = vmatprep.subr.mxu0 0.0
    %735 = vmatpush1.msra.mxu0 %v683
    %736 = vmatprep.subr.mxu0 0.0
    %737 = vmatpush1.msra.mxu0 %v684
    %738 = vmatprep.subr.mxu0 0.0
    %739 = vmatpush1.msra.mxu0 %v685
    %740 = vmatprep.subr.mxu0 0.0
    %741 = vmatpush1.msra.mxu0 %v686
    %742 = vmatprep.subr.mxu0 0.0
    %743 = vmatpush1.msra.mxu0 %v687
    %744 = vmatprep.subr.mxu0 0.0
    %745 = vmatpush1.msra.mxu0 %v688
    %746 = vmatprep.subr.mxu0 0.0
    %747 = vmatpush1.msra.mxu0 %v689
    %748 = vmatprep.subr.mxu0 0.0
    %749 = vmatpush1.msra.mxu0 %v690
    %750 = vmatprep.subr.mxu0 0.0
    %751 = vmatpush1.msra.mxu0 %v691
    %752 = vmatprep.subr.mxu0 0.0
    %753 = vmatpush1.msra.mxu0 %v692
    %754 = vmatprep.subr.mxu0 0.0
    %755 = vmatpush1.msra.mxu0 %v693
    %756 = vmatprep.subr.mxu0 0.0
    %757 = vmatpush1.msra.mxu0 %v694
    %758 = vmatprep.subr.mxu0 0.0
    %759 = vmatpush1.msra.mxu0 %v695
    %760 = vmatprep.mubr.f32.mxu0 %v651
    %761 = vmatmul.mubr.f32.gmra.mrb[0].mxu0 %v650
    %v762 = vpop.f32.mrb[0].mxu0
    %v763 = vadd.f32 0.0, %v762
    %v764 = vpop.f32.mrb[0].mxu0
    %765 = vdwg.mxu0
    %vm766 = vcmask 254976
    %767 = vst.msk [vmem:[#allocation10] sm:$0x3] %vm766, %v763
    %769 = vrot.lane.b32.xlu0 %v763, 96
    %v770 = vpop.permute.xlu0 %769
    %772 = vst.msk [vmem:[#allocation11] sm:$0x3] %vm766, %v770
    %v773 = vmul.f32 %v763, 0.5
    %v774 = vmul.f32 %v773, 1.442695
    %v775 = vpow.pop %v774
    %v776 = vld [vmem:[%s1] sm:$0x3]
    %778 = vrot.lane.b32.xlu0 %v775, 96
    %v779 = vpop.permute.xlu0 %778
    %v781 = vmul.f32 %v776, %v779
    %v782 = vadd.f32 %v781, %v763
    %783 = vst.msk [vmem:[#allocation13] sm:$0x3] %vm766, %v782
    %v784 = vadd.f32 %v763, 1.0
    %v785 = vmul.f32 %v763, %v763
    %787 = vrot.lane.b32.xlu0 %v785, 32
    %v788 = vpop.permute.xlu0 %787
    %v790 = vsub.f32 %v784, %v788
    %v791 = vmul.f32 %v763, 1.442695
    %v792 = vpow.pop %v791
    %v793 = vsub.f32 %v790, %v792
    %795 = vrot.lane.b32.xlu0 %v793, 96
    %v796 = vpop.permute.xlu0 %795
    %v798 = vsel %vm766, %v796, 0.0
    %799 = vadd.xlane.f32.xlu0 %v798
    %v800 = vpop.xlane.xlu0 %799
    %v801 = vrot.slane %v800, 4
    %v802 = vadd.f32 %v800, %v801
    %v803 = vrot.slane %v802, 2
    %v804 = vadd.f32 %v802, %v803
    %v805 = vrot.slane %v804, 1
    %v806 = vadd.f32 %v804, %v805
    %s807 = vtos %v806
    %v808 = vrcp.pop 64.0
    %s809 = vtos %v808
    %s810 = smul.f32 %s807, %s809
    %s811 = smul.f32 %s810, -0.5
    %v812 = vstv %s811
    %vm813 = vcmask 0
    %814 = vst.msk [vmem:[#allocation14] sm:$0x1] %vm813, %v812
    %v815 = vld [vmem:[%s5] sm:$0xff]
    %v816 = vld [vmem:[%s5 + $0x8] sm:$0xff]
    %v817 = vld [vmem:[%s5 + $0x10] sm:$0xff]
    %v818 = vld [vmem:[%s5 + $0x18] sm:$0xff]
    %v819 = vld [vmem:[%s5 + $0x20] sm:$0xff]
    %v820 = vld [vmem:[%s5 + $0x28] sm:$0xff]
    %v821 = vld [vmem:[%s5 + $0x30] sm:$0xff]
    %v822 = vld [vmem:[%s5 + $0x38] sm:$0xff]
    %vm823 = vcmask 261120
    %v825 = vsel %vm823, %v782, 0
    %827 = vmatprep.subr.mxu0 %v816
    %828 = vmatpush1.msra.mxu0 %v815
    %829 = vmatprep.subr.mxu0 %v818
    %830 = vmatpush1.msra.mxu0 %v817
    %831 = vmatprep.subr.mxu0 %v820
    %832 = vmatpush1.msra.mxu0 %v819
    %833 = vmatprep.subr.mxu0 %v822
    %834 = vmatpush1.msra.mxu0 %v821
    %835 = vmatprep.subr.mxu0 0.0
    %836 = vmatpush1.msra.mxu0 0.0
    %837 = vmatprep.subr.mxu0 0.0
    %838 = vmatpush1.msra.mxu0 0.0
    %839 = vmatprep.subr.mxu0 0.0
    %840 = vmatpush1.msra.mxu0 0.0
    %841 = vmatprep.subr.mxu0 0.0
    %842 = vmatpush1.msra.mxu0 0.0
    %843 = vmatprep.subr.mxu0 0.0
    %844 = vmatpush1.msra.mxu0 0.0
    %845 = vmatprep.subr.mxu0 0.0
    %846 = vmatpush1.msra.mxu0 0.0
    %847 = vmatprep.subr.mxu0 0.0
    %848 = vmatpush1.msra.mxu0 0.0
    %849 = vmatprep.subr.mxu0 0.0
    %850 = vmatpush1.msra.mxu0 0.0
    %851 = vmatprep.subr.mxu0 0.0
    %852 = vmatpush1.msra.mxu0 0.0
    %853 = vmatprep.subr.mxu0 0.0
    %854 = vmatpush1.msra.mxu0 0.0
    %855 = vmatprep.subr.mxu0 0.0
    %856 = vmatpush1.msra.mxu0 0.0
    %857 = vmatprep.subr.mxu0 0.0
    %858 = vmatpush1.msra.mxu0 0.0
    %859 = vmatprep.subr.mxu0 0.0
    %860 = vmatpush1.msra.mxu0 0.0
    %861 = vmatprep.subr.mxu0 0.0
    %862 = vmatpush1.msra.mxu0 0.0
    %863 = vmatprep.subr.mxu0 0.0
    %864 = vmatpush1.msra.mxu0 0.0
    %865 = vmatprep.subr.mxu0 0.0
    %866 = vmatpush1.msra.mxu0 0.0
    %867 = vmatprep.subr.mxu0 0.0
    %868 = vmatpush1.msra.mxu0 0.0
    %869 = vmatprep.subr.mxu0 0.0
    %870 = vmatpush1.msra.mxu0 0.0
    %871 = vmatprep.subr.mxu0 0.0
    %872 = vmatpush1.msra.mxu0 0.0
    %873 = vmatprep.subr.mxu0 0.0
    %874 = vmatpush1.msra.mxu0 0.0
    %875 = vmatprep.subr.mxu0 0.0
    %876 = vmatpush1.msra.mxu0 0.0
    %877 = vmatprep.subr.mxu0 0.0
    %878 = vmatpush1.msra.mxu0 0.0
    %879 = vmatprep.subr.mxu0 0.0
    %880 = vmatpush1.msra.mxu0 0.0
    %881 = vmatprep.subr.mxu0 0.0
    %882 = vmatpush1.msra.mxu0 0.0
    %883 = vmatprep.subr.mxu0 0.0
    %884 = vmatpush1.msra.mxu0 0.0
    %885 = vmatprep.subr.mxu0 0.0
    %886 = vmatpush1.msra.mxu0 0.0
    %887 = vmatprep.subr.mxu0 0.0
    %888 = vmatpush1.msra.mxu0 0.0
    %889 = vmatprep.subr.mxu0 0.0
    %890 = vmatpush1.msra.mxu0 0.0
    %891 = vmatprep.mubr.f32.mxu0 0.0
    %892 = vmatmul.mubr.f32.gmra.mrb[0].mxu0 %v825
    %v893 = vpop.f32.mrb[0].mxu0
    %v894 = vadd.f32 0.0, %v893
    %v895 = vpop.f32.mrb[0].mxu0
    %v896 = vadd.f32 0.0, %v895
    %897 = vdwg.mxu0
    %v898 = vmax.f32 %v894, 0.0
    %v899 = vmax.f32 %v896, 0.0
    %v900 = vld [vmem:[#allocation7] sm:$0xff]
    %v901 = vld [vmem:[#allocation7 + $0x8] sm:$0xff]
    %v902 = vld [vmem:[#allocation7 + $0x10] sm:$0xff]
    %v903 = vld [vmem:[#allocation7 + $0x18] sm:$0xff]
    %v904 = vld [vmem:[#allocation7 + $0x20] sm:$0xff]
    %v905 = vld [vmem:[#allocation7 + $0x28] sm:$0xff]
    %v906 = vld [vmem:[#allocation7 + $0x30] sm:$0xff]
    %v907 = vld [vmem:[#allocation7 + $0x38] sm:$0xff]
    %v908 = vld [vmem:[#allocation7 + $0x40] sm:$0xff]
    %v909 = vld [vmem:[#allocation7 + $0x48] sm:$0xff]
    %v910 = vld [vmem:[#allocation7 + $0x50] sm:$0xff]
    %v911 = vld [vmem:[#allocation7 + $0x58] sm:$0xff]
    %v912 = vld [vmem:[#allocation7 + $0x60] sm:$0xff]
    %v913 = vld [vmem:[#allocation7 + $0x68] sm:$0xff]
    %v914 = vld [vmem:[#allocation7 + $0x70] sm:$0xff]
    %v915 = vld [vmem:[#allocation7 + $0x78] sm:$0xff]
    %v916 = vld [vmem:[#allocation7 + $0x80] sm:$0xff]
    %v917 = vld [vmem:[#allocation7 + $0x88] sm:$0xff]
    %v918 = vld [vmem:[#allocation7 + $0x90] sm:$0xff]
    %v919 = vld [vmem:[#allocation7 + $0x98] sm:$0xff]
    %v920 = vld [vmem:[#allocation7 + $0xa0] sm:$0xff]
    %v921 = vld [vmem:[#allocation7 + $0xa8] sm:$0xff]
    %v922 = vld [vmem:[#allocation7 + $0xb0] sm:$0xff]
    %v923 = vld [vmem:[#allocation7 + $0xb8] sm:$0xff]
    %v924 = vld [vmem:[#allocation7 + $0xc0] sm:$0xff]
    %v925 = vld [vmem:[#allocation7 + $0xc8] sm:$0xff]
    %v926 = vld [vmem:[#allocation7 + $0xd0] sm:$0xff]
    %v927 = vld [vmem:[#allocation7 + $0xd8] sm:$0xff]
    %v928 = vld [vmem:[#allocation7 + $0xe0] sm:$0xff]
    %v929 = vld [vmem:[#allocation7 + $0xe8] sm:$0xff]
    %v930 = vld [vmem:[#allocation7 + $0xf0] sm:$0xff]
    %v931 = vld [vmem:[#allocation7 + $0xf8] sm:$0xff]
    %v932 = vld [vmem:[#allocation7 + $0x100] sm:$0xff]
    %v933 = vld [vmem:[#allocation7 + $0x108] sm:$0xff]
    %v934 = vld [vmem:[#allocation7 + $0x110] sm:$0xff]
    %v935 = vld [vmem:[#allocation7 + $0x118] sm:$0xff]
    %v936 = vld [vmem:[#allocation7 + $0x120] sm:$0xff]
    %v937 = vld [vmem:[#allocation7 + $0x128] sm:$0xff]
    %v938 = vld [vmem:[#allocation7 + $0x130] sm:$0xff]
    %v939 = vld [vmem:[#allocation7 + $0x138] sm:$0xff]
    %v940 = vld [vmem:[#allocation7 + $0x140] sm:$0xff]
    %v941 = vld [vmem:[#allocation7 + $0x148] sm:$0xff]
    %v942 = vld [vmem:[#allocation7 + $0x150] sm:$0xff]
    %v943 = vld [vmem:[#allocation7 + $0x158] sm:$0xff]
    %v944 = vld [vmem:[#allocation7 + $0x160] sm:$0xff]
    %v945 = vld [vmem:[#allocation7 + $0x168] sm:$0xff]
    %v946 = vld [vmem:[#allocation7 + $0x170] sm:$0xff]
    %v947 = vld [vmem:[#allocation7 + $0x178] sm:$0xff]
    %v948 = vld [vmem:[#allocation7 + $0x180] sm:$0xff]
    %v949 = vld [vmem:[#allocation7 + $0x188] sm:$0xff]
    %v950 = vld [vmem:[#allocation7 + $0x190] sm:$0xff]
    %v951 = vld [vmem:[#allocation7 + $0x198] sm:$0xff]
    %v952 = vld [vmem:[#allocation7 + $0x1a0] sm:$0xff]
    %v953 = vld [vmem:[#allocation7 + $0x1a8] sm:$0xff]
    %v954 = vld [vmem:[#allocation7 + $0x1b0] sm:$0xff]
    %v955 = vld [vmem:[#allocation7 + $0x1b8] sm:$0xff]
    %v956 = vld [vmem:[#allocation7 + $0x1c0] sm:$0xff]
    %v957 = vld [vmem:[#allocation7 + $0x1c8] sm:$0xff]
    %v958 = vld [vmem:[#allocation7 + $0x1d0] sm:$0xff]
    %v959 = vld [vmem:[#allocation7 + $0x1d8] sm:$0xff]
    %v960 = vld [vmem:[#allocation7 + $0x1e0] sm:$0xff]
    %v961 = vld [vmem:[#allocation7 + $0x1e8] sm:$0xff]
    %v962 = vld [vmem:[#allocation7 + $0x1f0] sm:$0xff]
    %v963 = vld [vmem:[#allocation7 + $0x1f8] sm:$0xff]
    %v964 = vld [vmem:[#allocation7 + $0x200] sm:$0xff]
    %v965 = vld [vmem:[#allocation7 + $0x208] sm:$0xff]
    %v966 = vld [vmem:[#allocation7 + $0x210] sm:$0xff]
    %v967 = vld [vmem:[#allocation7 + $0x218] sm:$0xff]
    %v968 = vld [vmem:[#allocation7 + $0x220] sm:$0xff]
    %v969 = vld [vmem:[#allocation7 + $0x228] sm:$0xff]
    %v970 = vld [vmem:[#allocation7 + $0x230] sm:$0xff]
    %v971 = vld [vmem:[#allocation7 + $0x238] sm:$0xff]
    %v972 = vld [vmem:[#allocation7 + $0x240] sm:$0xff]
    %v973 = vld [vmem:[#allocation7 + $0x248] sm:$0xff]
    %v974 = vld [vmem:[#allocation7 + $0x250] sm:$0xff]
    %v975 = vld [vmem:[#allocation7 + $0x258] sm:$0xff]
    %v976 = vld [vmem:[#allocation7 + $0x260] sm:$0xff]
    %v977 = vld [vmem:[#allocation7 + $0x268] sm:$0xff]
    %v978 = vld [vmem:[#allocation7 + $0x270] sm:$0xff]
    %v979 = vld [vmem:[#allocation7 + $0x278] sm:$0xff]
    %v980 = vld [vmem:[#allocation7 + $0x280] sm:$0xff]
    %v981 = vld [vmem:[#allocation7 + $0x288] sm:$0xff]
    %v982 = vld [vmem:[#allocation7 + $0x290] sm:$0xff]
    %v983 = vld [vmem:[#allocation7 + $0x298] sm:$0xff]
    %v984 = vld [vmem:[#allocation7 + $0x2a0] sm:$0xff]
    %v985 = vld [vmem:[#allocation7 + $0x2a8] sm:$0xff]
    %v986 = vld [vmem:[#allocation7 + $0x2b0] sm:$0xff]
    %v987 = vld [vmem:[#allocation7 + $0x2b8] sm:$0xff]
    %v988 = vld [vmem:[#allocation7 + $0x2c0] sm:$0xff]
    %v989 = vld [vmem:[#allocation7 + $0x2c8] sm:$0xff]
    %v990 = vld [vmem:[#allocation7 + $0x2d0] sm:$0xff]
    %v991 = vld [vmem:[#allocation7 + $0x2d8] sm:$0xff]
    %v992 = vld [vmem:[#allocation7 + $0x2e0] sm:$0xff]
    %v993 = vld [vmem:[#allocation7 + $0x2e8] sm:$0xff]
    %v994 = vld [vmem:[#allocation7 + $0x2f0] sm:$0xff]
    %v995 = vld [vmem:[#allocation7 + $0x2f8] sm:$0xff]
    %v996 = vld [vmem:[#allocation7 + $0x300] sm:$0xff]
    %v997 = vld [vmem:[#allocation7 + $0x308] sm:$0xff]
    %v998 = vld [vmem:[#allocation7 + $0x310] sm:$0xff]
    %v999 = vld [vmem:[#allocation7 + $0x318] sm:$0xff]
    %v1000 = vld [vmem:[#allocation7 + $0x320] sm:$0xff]
    %v1001 = vld [vmem:[#allocation7 + $0x328] sm:$0xff]
    %v1002 = vld [vmem:[#allocation7 + $0x330] sm:$0xff]
    %v1003 = vld [vmem:[#allocation7 + $0x338] sm:$0xff]
    %v1004 = vld [vmem:[#allocation7 + $0x340] sm:$0xff]
    %v1005 = vld [vmem:[#allocation7 + $0x348] sm:$0xff]
    %v1006 = vld [vmem:[#allocation7 + $0x350] sm:$0xff]
    %v1007 = vld [vmem:[#allocation7 + $0x358] sm:$0xff]
    %v1008 = vld [vmem:[#allocation7 + $0x360] sm:$0xff]
    %v1009 = vld [vmem:[#allocation7 + $0x368] sm:$0xff]
    %v1010 = vld [vmem:[#allocation7 + $0x370] sm:$0xff]
    %v1011 = vld [vmem:[#allocation7 + $0x378] sm:$0xff]
    %v1012 = vld [vmem:[#allocation7 + $0x380] sm:$0xff]
    %v1013 = vld [vmem:[#allocation7 + $0x388] sm:$0xff]
    %v1014 = vld [vmem:[#allocation7 + $0x390] sm:$0xff]
    %v1015 = vld [vmem:[#allocation7 + $0x398] sm:$0xff]
    %v1016 = vld [vmem:[#allocation7 + $0x3a0] sm:$0xff]
    %v1017 = vld [vmem:[#allocation7 + $0x3a8] sm:$0xff]
    %v1018 = vld [vmem:[#allocation7 + $0x3b0] sm:$0xff]
    %v1019 = vld [vmem:[#allocation7 + $0x3b8] sm:$0xff]
    %v1020 = vld [vmem:[#allocation7 + $0x3c0] sm:$0xff]
    %v1021 = vld [vmem:[#allocation7 + $0x3c8] sm:$0xff]
    %v1022 = vld [vmem:[#allocation7 + $0x3d0] sm:$0xff]
    %v1023 = vld [vmem:[#allocation7 + $0x3d8] sm:$0xff]
    %v1024 = vld [vmem:[#allocation7 + $0x3e0] sm:$0xff]
    %v1025 = vld [vmem:[#allocation7 + $0x3e8] sm:$0xff]
    %v1026 = vld [vmem:[#allocation7 + $0x3f0] sm:$0xff]
    %v1027 = vld [vmem:[#allocation7 + $0x3f8] sm:$0xff]
    %1028 = vmatprep.subr.mxu0 %v901
    %1029 = vmatpush1.msra.mxu0 %v900
    %1030 = vmatprep.subr.mxu0 %v905
    %1031 = vmatpush1.msra.mxu0 %v904
    %1032 = vmatprep.subr.mxu0 %v909
    %1033 = vmatpush1.msra.mxu0 %v908
    %1034 = vmatprep.subr.mxu0 %v913
    %1035 = vmatpush1.msra.mxu0 %v912
    %1036 = vmatprep.subr.mxu0 %v917
    %1037 = vmatpush1.msra.mxu0 %v916
    %1038 = vmatprep.subr.mxu0 %v921
    %1039 = vmatpush1.msra.mxu0 %v920
    %1040 = vmatprep.subr.mxu0 %v925
    %1041 = vmatpush1.msra.mxu0 %v924
    %1042 = vmatprep.subr.mxu0 %v929
    %1043 = vmatpush1.msra.mxu0 %v928
    %1044 = vmatprep.subr.mxu0 %v933
    %1045 = vmatpush1.msra.mxu0 %v932
    %1046 = vmatprep.subr.mxu0 %v937
    %1047 = vmatpush1.msra.mxu0 %v936
    %1048 = vmatprep.subr.mxu0 %v941
    %1049 = vmatpush1.msra.mxu0 %v940
    %1050 = vmatprep.subr.mxu0 %v945
    %1051 = vmatpush1.msra.mxu0 %v944
    %1052 = vmatprep.subr.mxu0 %v949
    %1053 = vmatpush1.msra.mxu0 %v948
    %1054 = vmatprep.subr.mxu0 %v953
    %1055 = vmatpush1.msra.mxu0 %v952
    %1056 = vmatprep.subr.mxu0 %v957
    %1057 = vmatpush1.msra.mxu0 %v956
    %1058 = vmatprep.subr.mxu0 %v961
    %1059 = vmatpush1.msra.mxu0 %v960
    %1060 = vmatprep.subr.mxu0 %v965
    %1061 = vmatpush1.msra.mxu0 %v964
    %1062 = vmatprep.subr.mxu0 %v969
    %1063 = vmatpush1.msra.mxu0 %v968
    %1064 = vmatprep.subr.mxu0 %v973
    %1065 = vmatpush1.msra.mxu0 %v972
    %1066 = vmatprep.subr.mxu0 %v977
    %1067 = vmatpush1.msra.mxu0 %v976
    %1068 = vmatprep.subr.mxu0 %v981
    %1069 = vmatpush1.msra.mxu0 %v980
    %1070 = vmatprep.subr.mxu0 %v985
    %1071 = vmatpush1.msra.mxu0 %v984
    %1072 = vmatprep.subr.mxu0 %v989
    %1073 = vmatpush1.msra.mxu0 %v988
    %1074 = vmatprep.subr.mxu0 %v993
    %1075 = vmatpush1.msra.mxu0 %v992
    %1076 = vmatprep.subr.mxu0 %v997
    %1077 = vmatpush1.msra.mxu0 %v996
    %1078 = vmatprep.subr.mxu0 %v1001
    %1079 = vmatpush1.msra.mxu0 %v1000
    %1080 = vmatprep.subr.mxu0 %v1005
    %1081 = vmatpush1.msra.mxu0 %v1004
    %1082 = vmatprep.subr.mxu0 %v1009
    %1083 = vmatpush1.msra.mxu0 %v1008
    %1084 = vmatprep.subr.mxu0 %v1013
    %1085 = vmatpush1.msra.mxu0 %v1012
    %1086 = vmatprep.subr.mxu0 %v1017
    %1087 = vmatpush1.msra.mxu0 %v1016
    %1088 = vmatprep.subr.mxu0 %v1021
    %1089 = vmatpush1.msra.mxu0 %v1020
    %1090 = vmatprep.subr.mxu0 %v1025
    %1091 = vmatpush1.msra.mxu0 %v1024
    %1092 = vmatprep.mubr.f32.mxu0 %v899
    %1093 = vmatmul.mubr.f32.gmra.mrb[0].mxu0 %v898
    %v1094 = vpop.f32.mrb[0].mxu0
    %v1095 = vadd.f32 0.0, %v1094
    %v1096 = vpop.f32.mrb[0].mxu0
    %v1097 = vadd.f32 0.0, %v1096
    %1098 = vdwg.mxu0
    %1099 = vmatprep.subr.mxu0 %v903
    %1100 = vmatpush1.msra.mxu0 %v902
    %1101 = vmatprep.subr.mxu0 %v907
    %1102 = vmatpush1.msra.mxu0 %v906
    %1103 = vmatprep.subr.mxu0 %v911
    %1104 = vmatpush1.msra.mxu0 %v910
    %1105 = vmatprep.subr.mxu0 %v915
    %1106 = vmatpush1.msra.mxu0 %v914
    %1107 = vmatprep.subr.mxu0 %v919
    %1108 = vmatpush1.msra.mxu0 %v918
    %1109 = vmatprep.subr.mxu0 %v923
    %1110 = vmatpush1.msra.mxu0 %v922
    %1111 = vmatprep.subr.mxu0 %v927
    %1112 = vmatpush1.msra.mxu0 %v926
    %1113 = vmatprep.subr.mxu0 %v931
    %1114 = vmatpush1.msra.mxu0 %v930
    %1115 = vmatprep.subr.mxu0 %v935
    %1116 = vmatpush1.msra.mxu0 %v934
    %1117 = vmatprep.subr.mxu0 %v939
    %1118 = vmatpush1.msra.mxu0 %v938
    %1119 = vmatprep.subr.mxu0 %v943
    %1120 = vmatpush1.msra.mxu0 %v942
    %1121 = vmatprep.subr.mxu0 %v947
    %1122 = vmatpush1.msra.mxu0 %v946
    %1123 = vmatprep.subr.mxu0 %v951
    %1124 = vmatpush1.msra.mxu0 %v950
    %1125 = vmatprep.subr.mxu0 %v955
    %1126 = vmatpush1.msra.mxu0 %v954
    %1127 = vmatprep.subr.mxu0 %v959
    %1128 = vmatpush1.msra.mxu0 %v958
    %1129 = vmatprep.subr.mxu0 %v963
    %1130 = vmatpush1.msra.mxu0 %v962
    %1131 = vmatprep.subr.mxu0 %v967
    %1132 = vmatpush1.msra.mxu0 %v966
    %1133 = vmatprep.subr.mxu0 %v971
    %1134 = vmatpush1.msra.mxu0 %v970
    %1135 = vmatprep.subr.mxu0 %v975
    %1136 = vmatpush1.msra.mxu0 %v974
    %1137 = vmatprep.subr.mxu0 %v979
    %1138 = vmatpush1.msra.mxu0 %v978
    %1139 = vmatprep.subr.mxu0 %v983
    %1140 = vmatpush1.msra.mxu0 %v982
    %1141 = vmatprep.subr.mxu0 %v987
    %1142 = vmatpush1.msra.mxu0 %v986
    %1143 = vmatprep.subr.mxu0 %v991
    %1144 = vmatpush1.msra.mxu0 %v990
    %1145 = vmatprep.subr.mxu0 %v995
    %1146 = vmatpush1.msra.mxu0 %v994
    %1147 = vmatprep.subr.mxu0 %v999
    %1148 = vmatpush1.msra.mxu0 %v998
    %1149 = vmatprep.subr.mxu0 %v1003
    %1150 = vmatpush1.msra.mxu0 %v1002
    %1151 = vmatprep.subr.mxu0 %v1007
    %1152 = vmatpush1.msra.mxu0 %v1006
    %1153 = vmatprep.subr.mxu0 %v1011
    %1154 = vmatpush1.msra.mxu0 %v1010
    %1155 = vmatprep.subr.mxu0 %v1015
    %1156 = vmatpush1.msra.mxu0 %v1014
    %1157 = vmatprep.subr.mxu0 %v1019
    %1158 = vmatpush1.msra.mxu0 %v1018
    %1159 = vmatprep.subr.mxu0 %v1023
    %1160 = vmatpush1.msra.mxu0 %v1022
    %1161 = vmatprep.subr.mxu0 %v1027
    %1162 = vmatpush1.msra.mxu0 %v1026
    %1163 = vmatprep.mubr.f32.mxu0 %v899
    %1164 = vmatmul.mubr.f32.gmra.mrb[0].mxu0 %v898
    %v1165 = vpop.f32.mrb[0].mxu0
    %v1166 = vadd.f32 0.0, %v1165
    %v1167 = vpop.f32.mrb[0].mxu0
    %v1168 = vadd.f32 0.0, %v1167
    %1169 = vdwg.mxu0
    %v1170 = vmax.f32 %v1095, 0.0
    %v1171 = vmax.f32 %v1097, 0.0
    %v1172 = vmax.f32 %v1166, 0.0
    %v1173 = vmax.f32 %v1168, 0.0
    %v1174 = vld [vmem:[#allocation8] sm:$0xff]
    %v1175 = vld [vmem:[#allocation8 + $0x8] sm:$0xff]
    %v1176 = vld [vmem:[#allocation8 + $0x10] sm:$0xff]
    %v1177 = vld [vmem:[#allocation8 + $0x18] sm:$0xff]
    %v1178 = vld [vmem:[#allocation8 + $0x20] sm:$0xff]
    %v1179 = vld [vmem:[#allocation8 + $0x28] sm:$0xff]
    %v1180 = vld [vmem:[#allocation8 + $0x30] sm:$0xff]
    %v1181 = vld [vmem:[#allocation8 + $0x38] sm:$0xff]
    %v1182 = vld [vmem:[#allocation8 + $0x40] sm:$0xff]
    %v1183 = vld [vmem:[#allocation8 + $0x48] sm:$0xff]
    %v1184 = vld [vmem:[#allocation8 + $0x50] sm:$0xff]
    %v1185 = vld [vmem:[#allocation8 + $0x58] sm:$0xff]
    %v1186 = vld [vmem:[#allocation8 + $0x60] sm:$0xff]
    %v1187 = vld [vmem:[#allocation8 + $0x68] sm:$0xff]
    %v1188 = vld [vmem:[#allocation8 + $0x70] sm:$0xff]
    %v1189 = vld [vmem:[#allocation8 + $0x78] sm:$0xff]
    %v1190 = vld [vmem:[#allocation8 + $0x80] sm:$0xff]
    %v1191 = vld [vmem:[#allocation8 + $0x88] sm:$0xff]
    %v1192 = vld [vmem:[#allocation8 + $0x90] sm:$0xff]
    %v1193 = vld [vmem:[#allocation8 + $0x98] sm:$0xff]
    %v1194 = vld [vmem:[#allocation8 + $0xa0] sm:$0xff]
    %v1195 = vld [vmem:[#allocation8 + $0xa8] sm:$0xff]
    %v1196 = vld [vmem:[#allocation8 + $0xb0] sm:$0xff]
    %v1197 = vld [vmem:[#allocation8 + $0xb8] sm:$0xff]
    %v1198 = vld [vmem:[#allocation8 + $0xc0] sm:$0xff]
    %v1199 = vld [vmem:[#allocation8 + $0xc8] sm:$0xff]
    %v1200 = vld [vmem:[#allocation8 + $0xd0] sm:$0xff]
    %v1201 = vld [vmem:[#allocation8 + $0xd8] sm:$0xff]
    %v1202 = vld [vmem:[#allocation8 + $0xe0] sm:$0xff]
    %v1203 = vld [vmem:[#allocation8 + $0xe8] sm:$0xff]
    %v1204 = vld [vmem:[#allocation8 + $0xf0] sm:$0xff]
    %v1205 = vld [vmem:[#allocation8 + $0xf8] sm:$0xff]
    %v1206 = vld [vmem:[#allocation8 + $0x100] sm:$0xff]
    %v1207 = vld [vmem:[#allocation8 + $0x108] sm:$0xff]
    %v1208 = vld [vmem:[#allocation8 + $0x110] sm:$0xff]
    %v1209 = vld [vmem:[#allocation8 + $0x118] sm:$0xff]
    %v1210 = vld [vmem:[#allocation8 + $0x120] sm:$0xff]
    %v1211 = vld [vmem:[#allocation8 + $0x128] sm:$0xff]
    %v1212 = vld [vmem:[#allocation8 + $0x130] sm:$0xff]
    %v1213 = vld [vmem:[#allocation8 + $0x138] sm:$0xff]
    %v1214 = vld [vmem:[#allocation8 + $0x140] sm:$0xff]
    %v1215 = vld [vmem:[#allocation8 + $0x148] sm:$0xff]
    %v1216 = vld [vmem:[#allocation8 + $0x150] sm:$0xff]
    %v1217 = vld [vmem:[#allocation8 + $0x158] sm:$0xff]
    %v1218 = vld [vmem:[#allocation8 + $0x160] sm:$0xff]
    %v1219 = vld [vmem:[#allocation8 + $0x168] sm:$0xff]
    %v1220 = vld [vmem:[#allocation8 + $0x170] sm:$0xff]
    %v1221 = vld [vmem:[#allocation8 + $0x178] sm:$0xff]
    %v1222 = vld [vmem:[#allocation8 + $0x180] sm:$0xff]
    %v1223 = vld [vmem:[#allocation8 + $0x188] sm:$0xff]
    %v1224 = vld [vmem:[#allocation8 + $0x190] sm:$0xff]
    %v1225 = vld [vmem:[#allocation8 + $0x198] sm:$0xff]
    %v1226 = vld [vmem:[#allocation8 + $0x1a0] sm:$0xff]
    %v1227 = vld [vmem:[#allocation8 + $0x1a8] sm:$0xff]
    %v1228 = vld [vmem:[#allocation8 + $0x1b0] sm:$0xff]
    %v1229 = vld [vmem:[#allocation8 + $0x1b8] sm:$0xff]
    %v1230 = vld [vmem:[#allocation8 + $0x1c0] sm:$0xff]
    %v1231 = vld [vmem:[#allocation8 + $0x1c8] sm:$0xff]
    %v1232 = vld [vmem:[#allocation8 + $0x1d0] sm:$0xff]
    %v1233 = vld [vmem:[#allocation8 + $0x1d8] sm:$0xff]
    %v1234 = vld [vmem:[#allocation8 + $0x1e0] sm:$0xff]
    %v1235 = vld [vmem:[#allocation8 + $0x1e8] sm:$0xff]
    %v1236 = vld [vmem:[#allocation8 + $0x1f0] sm:$0xff]
    %v1237 = vld [vmem:[#allocation8 + $0x1f8] sm:$0xff]
    %v1238 = vld [vmem:[#allocation8 + $0x200] sm:$0xff]
    %v1239 = vld [vmem:[#allocation8 + $0x208] sm:$0xff]
    %v1240 = vld [vmem:[#allocation8 + $0x210] sm:$0xff]
    %v1241 = vld [vmem:[#allocation8 + $0x218] sm:$0xff]
    %v1242 = vld [vmem:[#allocation8 + $0x220] sm:$0xff]
    %v1243 = vld [vmem:[#allocation8 + $0x228] sm:$0xff]
    %v1244 = vld [vmem:[#allocation8 + $0x230] sm:$0xff]
    %v1245 = vld [vmem:[#allocation8 + $0x238] sm:$0xff]
    %v1246 = vld [vmem:[#allocation8 + $0x240] sm:$0xff]
    %v1247 = vld [vmem:[#allocation8 + $0x248] sm:$0xff]
    %v1248 = vld [vmem:[#allocation8 + $0x250] sm:$0xff]
    %v1249 = vld [vmem:[#allocation8 + $0x258] sm:$0xff]
    %v1250 = vld [vmem:[#allocation8 + $0x260] sm:$0xff]
    %v1251 = vld [vmem:[#allocation8 + $0x268] sm:$0xff]
    %v1252 = vld [vmem:[#allocation8 + $0x270] sm:$0xff]
    %v1253 = vld [vmem:[#allocation8 + $0x278] sm:$0xff]
    %v1254 = vld [vmem:[#allocation8 + $0x280] sm:$0xff]
    %v1255 = vld [vmem:[#allocation8 + $0x288] sm:$0xff]
    %v1256 = vld [vmem:[#allocation8 + $0x290] sm:$0xff]
    %v1257 = vld [vmem:[#allocation8 + $0x298] sm:$0xff]
    %v1258 = vld [vmem:[#allocation8 + $0x2a0] sm:$0xff]
    %v1259 = vld [vmem:[#allocation8 + $0x2a8] sm:$0xff]
    %v1260 = vld [vmem:[#allocation8 + $0x2b0] sm:$0xff]
    %v1261 = vld [vmem:[#allocation8 + $0x2b8] sm:$0xff]
    %v1262 = vld [vmem:[#allocation8 + $0x2c0] sm:$0xff]
    %v1263 = vld [vmem:[#allocation8 + $0x2c8] sm:$0xff]
    %v1264 = vld [vmem:[#allocation8 + $0x2d0] sm:$0xff]
    %v1265 = vld [vmem:[#allocation8 + $0x2d8] sm:$0xff]
    %v1266 = vld [vmem:[#allocation8 + $0x2e0] sm:$0xff]
    %v1267 = vld [vmem:[#allocation8 + $0x2e8] sm:$0xff]
    %v1268 = vld [vmem:[#allocation8 + $0x2f0] sm:$0xff]
    %v1269 = vld [vmem:[#allocation8 + $0x2f8] sm:$0xff]
    %v1270 = vld [vmem:[#allocation8 + $0x300] sm:$0xff]
    %v1271 = vld [vmem:[#allocation8 + $0x308] sm:$0xff]
    %v1272 = vld [vmem:[#allocation8 + $0x310] sm:$0xff]
    %v1273 = vld [vmem:[#allocation8 + $0x318] sm:$0xff]
    %v1274 = vld [vmem:[#allocation8 + $0x320] sm:$0xff]
    %v1275 = vld [vmem:[#allocation8 + $0x328] sm:$0xff]
    %v1276 = vld [vmem:[#allocation8 + $0x330] sm:$0xff]
    %v1277 = vld [vmem:[#allocation8 + $0x338] sm:$0xff]
    %v1278 = vld [vmem:[#allocation8 + $0x340] sm:$0xff]
    %v1279 = vld [vmem:[#allocation8 + $0x348] sm:$0xff]
    %v1280 = vld [vmem:[#allocation8 + $0x350] sm:$0xff]
    %v1281 = vld [vmem:[#allocation8 + $0x358] sm:$0xff]
    %v1282 = vld [vmem:[#allocation8 + $0x360] sm:$0xff]
    %v1283 = vld [vmem:[#allocation8 + $0x368] sm:$0xff]
    %v1284 = vld [vmem:[#allocation8 + $0x370] sm:$0xff]
    %v1285 = vld [vmem:[#allocation8 + $0x378] sm:$0xff]
    %v1286 = vld [vmem:[#allocation8 + $0x380] sm:$0xff]
    %v1287 = vld [vmem:[#allocation8 + $0x388] sm:$0xff]
    %v1288 = vld [vmem:[#allocation8 + $0x390] sm:$0xff]
    %v1289 = vld [vmem:[#allocation8 + $0x398] sm:$0xff]
    %v1290 = vld [vmem:[#allocation8 + $0x3a0] sm:$0xff]
    %v1291 = vld [vmem:[#allocation8 + $0x3a8] sm:$0xff]
    %v1292 = vld [vmem:[#allocation8 + $0x3b0] sm:$0xff]
    %v1293 = vld [vmem:[#allocation8 + $0x3b8] sm:$0xff]
    %v1294 = vld [vmem:[#allocation8 + $0x3c0] sm:$0xff]
    %v1295 = vld [vmem:[#allocation8 + $0x3c8] sm:$0xff]
    %v1296 = vld [vmem:[#allocation8 + $0x3d0] sm:$0xff]
    %v1297 = vld [vmem:[#allocation8 + $0x3d8] sm:$0xff]
    %v1298 = vld [vmem:[#allocation8 + $0x3e0] sm:$0xff]
    %v1299 = vld [vmem:[#allocation8 + $0x3e8] sm:$0xff]
    %v1300 = vld [vmem:[#allocation8 + $0x3f0] sm:$0xff]
    %v1301 = vld [vmem:[#allocation8 + $0x3f8] sm:$0xff]
    %1302 = vmatprep.subr.mxu0 %v1175
    %1303 = vmatpush1.msra.mxu0 %v1174
    %1304 = vmatprep.subr.mxu0 %v1177
    %1305 = vmatpush1.msra.mxu0 %v1176
    %1306 = vmatprep.subr.mxu0 %v1179
    %1307 = vmatpush1.msra.mxu0 %v1178
    %1308 = vmatprep.subr.mxu0 %v1181
    %1309 = vmatpush1.msra.mxu0 %v1180
    %1310 = vmatprep.subr.mxu0 %v1183
    %1311 = vmatpush1.msra.mxu0 %v1182
    %1312 = vmatprep.subr.mxu0 %v1185
    %1313 = vmatpush1.msra.mxu0 %v1184
    %1314 = vmatprep.subr.mxu0 %v1187
    %1315 = vmatpush1.msra.mxu0 %v1186
    %1316 = vmatprep.subr.mxu0 %v1189
    %1317 = vmatpush1.msra.mxu0 %v1188
    %1318 = vmatprep.subr.mxu0 %v1191
    %1319 = vmatpush1.msra.mxu0 %v1190
    %1320 = vmatprep.subr.mxu0 %v1193
    %1321 = vmatpush1.msra.mxu0 %v1192
    %1322 = vmatprep.subr.mxu0 %v1195
    %1323 = vmatpush1.msra.mxu0 %v1194
    %1324 = vmatprep.subr.mxu0 %v1197
    %1325 = vmatpush1.msra.mxu0 %v1196
    %1326 = vmatprep.subr.mxu0 %v1199
    %1327 = vmatpush1.msra.mxu0 %v1198
    %1328 = vmatprep.subr.mxu0 %v1201
    %1329 = vmatpush1.msra.mxu0 %v1200
    %1330 = vmatprep.subr.mxu0 %v1203
    %1331 = vmatpush1.msra.mxu0 %v1202
    %1332 = vmatprep.subr.mxu0 %v1205
    %1333 = vmatpush1.msra.mxu0 %v1204
    %1334 = vmatprep.subr.mxu0 %v1207
    %1335 = vmatpush1.msra.mxu0 %v1206
    %1336 = vmatprep.subr.mxu0 %v1209
    %1337 = vmatpush1.msra.mxu0 %v1208
    %1338 = vmatprep.subr.mxu0 %v1211
    %1339 = vmatpush1.msra.mxu0 %v1210
    %1340 = vmatprep.subr.mxu0 %v1213
    %1341 = vmatpush1.msra.mxu0 %v1212
    %1342 = vmatprep.subr.mxu0 %v1215
    %1343 = vmatpush1.msra.mxu0 %v1214
    %1344 = vmatprep.subr.mxu0 %v1217
    %1345 = vmatpush1.msra.mxu0 %v1216
    %1346 = vmatprep.subr.mxu0 %v1219
    %1347 = vmatpush1.msra.mxu0 %v1218
    %1348 = vmatprep.subr.mxu0 %v1221
    %1349 = vmatpush1.msra.mxu0 %v1220
    %1350 = vmatprep.subr.mxu0 %v1223
    %1351 = vmatpush1.msra.mxu0 %v1222
    %1352 = vmatprep.subr.mxu0 %v1225
    %1353 = vmatpush1.msra.mxu0 %v1224
    %1354 = vmatprep.subr.mxu0 %v1227
    %1355 = vmatpush1.msra.mxu0 %v1226
    %1356 = vmatprep.subr.mxu0 %v1229
    %1357 = vmatpush1.msra.mxu0 %v1228
    %1358 = vmatprep.subr.mxu0 %v1231
    %1359 = vmatpush1.msra.mxu0 %v1230
    %1360 = vmatprep.subr.mxu0 %v1233
    %1361 = vmatpush1.msra.mxu0 %v1232
    %1362 = vmatprep.subr.mxu0 %v1235
    %1363 = vmatpush1.msra.mxu0 %v1234
    %1364 = vmatprep.subr.mxu0 %v1237
    %1365 = vmatpush1.msra.mxu0 %v1236
    %1366 = vmatprep.mubr.f32.mxu0 %v1171
    %1367 = vmatmul.mubr.f32.gmra.mrb[0].mxu0 %v1170
    %v1368 = vpop.f32.mrb[0].mxu0
    %v1369 = vadd.f32 0.0, %v1368
    %v1370 = vpop.f32.mrb[0].mxu0
    %v1371 = vadd.f32 0.0, %v1370
    %1372 = vdwg.mxu0
    %1373 = vmatprep.subr.mxu0 %v1239
    %1374 = vmatpush1.msra.mxu0 %v1238
    %1375 = vmatprep.subr.mxu0 %v1241
    %1376 = vmatpush1.msra.mxu0 %v1240
    %1377 = vmatprep.subr.mxu0 %v1243
    %1378 = vmatpush1.msra.mxu0 %v1242
    %1379 = vmatprep.subr.mxu0 %v1245
    %1380 = vmatpush1.msra.mxu0 %v1244
    %1381 = vmatprep.subr.mxu0 %v1247
    %1382 = vmatpush1.msra.mxu0 %v1246
    %1383 = vmatprep.subr.mxu0 %v1249
    %1384 = vmatpush1.msra.mxu0 %v1248
    %1385 = vmatprep.subr.mxu0 %v1251
    %1386 = vmatpush1.msra.mxu0 %v1250
    %1387 = vmatprep.subr.mxu0 %v1253
    %1388 = vmatpush1.msra.mxu0 %v1252
    %1389 = vmatprep.subr.mxu0 %v1255
    %1390 = vmatpush1.msra.mxu0 %v1254
    %1391 = vmatprep.subr.mxu0 %v1257
    %1392 = vmatpush1.msra.mxu0 %v1256
    %1393 = vmatprep.subr.mxu0 %v1259
    %1394 = vmatpush1.msra.mxu0 %v1258
    %1395 = vmatprep.subr.mxu0 %v1261
    %1396 = vmatpush1.msra.mxu0 %v1260
    %1397 = vmatprep.subr.mxu0 %v1263
    %1398 = vmatpush1.msra.mxu0 %v1262
    %1399 = vmatprep.subr.mxu0 %v1265
    %1400 = vmatpush1.msra.mxu0 %v1264
    %1401 = vmatprep.subr.mxu0 %v1267
    %1402 = vmatpush1.msra.mxu0 %v1266
    %1403 = vmatprep.subr.mxu0 %v1269
    %1404 = vmatpush1.msra.mxu0 %v1268
    %1405 = vmatprep.subr.mxu0 %v1271
    %1406 = vmatpush1.msra.mxu0 %v1270
    %1407 = vmatprep.subr.mxu0 %v1273
    %1408 = vmatpush1.msra.mxu0 %v1272
    %1409 = vmatprep.subr.mxu0 %v1275
    %1410 = vmatpush1.msra.mxu0 %v1274
    %1411 = vmatprep.subr.mxu0 %v1277
    %1412 = vmatpush1.msra.mxu0 %v1276
    %1413 = vmatprep.subr.mxu0 %v1279
    %1414 = vmatpush1.msra.mxu0 %v1278
    %1415 = vmatprep.subr.mxu0 %v1281
    %1416 = vmatpush1.msra.mxu0 %v1280
    %1417 = vmatprep.subr.mxu0 %v1283
    %1418 = vmatpush1.msra.mxu0 %v1282
    %1419 = vmatprep.subr.mxu0 %v1285
    %1420 = vmatpush1.msra.mxu0 %v1284
    %1421 = vmatprep.subr.mxu0 %v1287
    %1422 = vmatpush1.msra.mxu0 %v1286
    %1423 = vmatprep.subr.mxu0 %v1289
    %1424 = vmatpush1.msra.mxu0 %v1288
    %1425 = vmatprep.subr.mxu0 %v1291
    %1426 = vmatpush1.msra.mxu0 %v1290
    %1427 = vmatprep.subr.mxu0 %v1293
    %1428 = vmatpush1.msra.mxu0 %v1292
    %1429 = vmatprep.subr.mxu0 %v1295
    %1430 = vmatpush1.msra.mxu0 %v1294
    %1431 = vmatprep.subr.mxu0 %v1297
    %1432 = vmatpush1.msra.mxu0 %v1296
    %1433 = vmatprep.subr.mxu0 %v1299
    %1434 = vmatpush1.msra.mxu0 %v1298
    %1435 = vmatprep.subr.mxu0 %v1301
    %1436 = vmatpush1.msra.mxu0 %v1300
    %1437 = vmatprep.mubr.f32.mxu0 %v1173
    %1438 = vmatmul.mubr.f32.gmra.mrb[0].mxu0 %v1172
    %v1439 = vpop.f32.mrb[0].mxu0
    %v1440 = vadd.f32 %v1369, %v1439
    %v1441 = vpop.f32.mrb[0].mxu0
    %v1442 = vadd.f32 %v1371, %v1441
    %1443 = vdwg.mxu0
    %v1444 = vmax.f32 %v1440, 0.0
    %v1445 = vmax.f32 %v1442, 0.0
    %v1446 = vtanh.pop %v1444
    %v1447 = vtanh.pop %v1445
    %v1450 = vcombine.low %v1446, %v1447
    %v1452 = vunpack.c.l.s4 1983009808
    %v1453 = vunpack.c.0.s8 %v1452
    %v1454 = vlaneseq
    %v1455 = vshrl.u32 %v1454, 7
    %v1456 = vsub.s32 %v1453, %v1455
    %v1457 = vrot.slane %v1450, %v1456
    %1459 = vst [vmem:[%s12] sm:$0xf] %v1457
    %v1460 = vsub.f32 %v1446, %v230
    %v1461 = vsub.f32 %v1447, %v231
    %v1462 = vmul.f32 %v1460, %v1460
    %v1463 = vmul.f32 %v1461, %v1461
    %vm1464 = vcmask 1041408
    %v1465 = vsel %vm1464, %v1462, 0.0
    %v1466 = vsel %vm1464, %v1463, 0.0
    %v1467 = vadd.f32 %v1465, %v1466
    %1468 = vadd.xlane.f32.xlu0 %v1467
    %v1469 = vpop.xlane.xlu0 %1468
    %v1470 = vrot.slane %v1469, 4
    %v1471 = vadd.f32 %v1469, %v1470
    %v1472 = vrot.slane %v1471, 2
    %v1473 = vadd.f32 %v1471, %v1472
    %v1474 = vrot.slane %v1473, 1
    %v1475 = vadd.f32 %v1473, %v1474
    %s1476 = vtos %v1475
    %v1477 = vrcp.pop 512.0
    %s1478 = vtos %v1477
    %s1479 = smul.f32 %s1476, %s1478
    %v1480 = vstv %s1479
    %1481 = vst.msk [vmem:[#allocation16] sm:$0x1] %vm813, %v1480
    // Predicated region
    $region50: #{conv_vae_forward.1} parent=1 // pred_check
      _
    $region51: #{conv_vae_forward.1} parent=1 // pred_check_branch
      %1483 = sbr.rel (0) target = $region53
    $region52: #{conv_vae_forward.1} parent=1 // pred_region
      _
    $region53: #{conv_vae_forward.1} parent=1 // pred_fallthru
      _
    // Predicated region
    $region54: #{conv_vae_forward.1} parent=1 // pred_check
      _
    $region55: #{conv_vae_forward.1} parent=1 // pred_check_branch
      %1485 = sbr.rel (0) target = $region57
    $region56: #{conv_vae_forward.1} parent=1 // pred_region
      %s1487 = ssub.s32 32, 32
      %1488 = vsyncadd [#allocation4], %s1487
      %s1490 = sshll.u32 [#allocation10], 4
      %s1491 = int_to_ptr.vmem [resolvable:$true] %s1490
      %1493 = dma.vmem_to_hbm [thread:$0]  %s1491, 32, %s9, [#allocation4]
    $region57: #{conv_vae_forward.1} parent=1 // pred_fallthru
      _
    // Predicated region
    $region58: #{conv_vae_forward.1} parent=1 // pred_check
      _
    $region59: #{conv_vae_forward.1} parent=1 // pred_check_branch
      %1495 = sbr.rel (0) target = $region61
    $region60: #{conv_vae_forward.1} parent=1 // pred_region
      %s1497 = ssub.s32 32, 32
      %1498 = vsyncadd [#allocation12], %s1497
      %s1500 = sshll.u32 [#allocation11], 4
      %s1501 = int_to_ptr.vmem [resolvable:$true] %s1500
      %1503 = dma.vmem_to_hbm [thread:$0]  %s1501, 32, %s10, [#allocation12]
    $region61: #{conv_vae_forward.1} parent=1 // pred_fallthru
      _
    // Predicated region
    $region62: #{conv_vae_forward.1} parent=1 // pred_check
      _
    $region63: #{conv_vae_forward.1} parent=1 // pred_check_branch
      %1505 = sbr.rel (0) target = $region65
    $region64: #{conv_vae_forward.1} parent=1 // pred_region
      %s1507 = ssub.s32 32, 32
      %1508 = vsyncadd [#allocation12], %s1507
      %s1510 = sshll.u32 [#allocation13], 4
      %s1511 = int_to_ptr.vmem [resolvable:$true] %s1510
      %1513 = dma.vmem_to_hbm [thread:$0]  %s1511, 32, %s11, [#allocation12]
    $region65: #{conv_vae_forward.1} parent=1 // pred_fallthru
      _
    // Predicated region
    $region66: #{conv_vae_forward.1} parent=1 // pred_check
      _
    $region67: #{conv_vae_forward.1} parent=1 // pred_check_branch
      %1515 = sbr.rel (0) target = $region69
    $region68: #{conv_vae_forward.1} parent=1 // pred_region
      _
    $region69: #{conv_vae_forward.1} parent=1 // pred_fallthru
      _
    // Predicated region
    $region70: #{conv_vae_forward.1} parent=1 // pred_check
      _
    $region71: #{conv_vae_forward.1} parent=1 // pred_check_branch
      %1517 = sbr.rel (0) target = $region73
    $region72: #{conv_vae_forward.1} parent=1 // pred_region
      %s1519 = ssub.s32 16, 16
      %1520 = vsyncadd [#allocation15], %s1519
      %s1522 = sshll.u32 [#allocation14], 4
      %s1523 = int_to_ptr.vmem [resolvable:$true] %s1522
      %1525 = dma.vmem_to_hbm [thread:$0]  %s1523, 16, %s13, [#allocation15]
    $region73: #{conv_vae_forward.1} parent=1 // pred_fallthru
      _
    // Predicated region
    $region74: #{conv_vae_forward.1} parent=1 // pred_check
      _
    $region75: #{conv_vae_forward.1} parent=1 // pred_check_branch
      %1527 = sbr.rel (0) target = $region77
    $region76: #{conv_vae_forward.1} parent=1 // pred_region
      %s1529 = ssub.s32 16, 16
      %1530 = vsyncadd [#allocation15], %s1529
      %s1532 = sshll.u32 [#allocation16], 4
      %s1533 = int_to_ptr.vmem [resolvable:$true] %s1532
      %1535 = dma.vmem_to_hbm [thread:$0]  %s1533, 16, %s14, [#allocation15]
    $region77: #{conv_vae_forward.1} parent=1 // pred_fallthru
      _
    // Predicated region
    $region78: #{conv_vae_forward.1} parent=1 // pred_check
      _
    $region79: #{conv_vae_forward.1} parent=1 // pred_check_branch
      %1537 = sbr.rel (0) target = $region81
    $region80: #{conv_vae_forward.1} parent=1 // pred_region
      _
    $region81: #{conv_vae_forward.1} parent=1 // pred_fallthru
      _
    // Predicated region
    $region82: #{conv_vae_forward.1} parent=1 // pred_check
      _
    $region83: #{conv_vae_forward.1} parent=1 // pred_check_branch
      %1539 = sbr.rel (0) target = $region85
    $region84: #{conv_vae_forward.1} parent=1 // pred_region
      %1540 = dma.done [#allocation4], 32
    $region85: #{conv_vae_forward.1} parent=1 // pred_fallthru
      _
    // Predicated region
    $region86: #{conv_vae_forward.1} parent=1 // pred_check
      _
    $region87: #{conv_vae_forward.1} parent=1 // pred_check_branch
      %1542 = sbr.rel (0) target = $region89
    $region88: #{conv_vae_forward.1} parent=1 // pred_region
      %1543 = dma.done [#allocation12], 32
    $region89: #{conv_vae_forward.1} parent=1 // pred_fallthru
      _
    // Predicated region
    $region90: #{conv_vae_forward.1} parent=1 // pred_check
      _
    $region91: #{conv_vae_forward.1} parent=1 // pred_check_branch
      %1545 = sbr.rel (0) target = $region93
    $region92: #{conv_vae_forward.1} parent=1 // pred_region
      %1546 = dma.done [#allocation12], 32
    $region93: #{conv_vae_forward.1} parent=1 // pred_fallthru
      _
    // Predicated region
    $region94: #{conv_vae_forward.1} parent=1 // pred_check
      _
    $region95: #{conv_vae_forward.1} parent=1 // pred_check_branch
      %1548 = sbr.rel (0) target = $region97
    $region96: #{conv_vae_forward.1} parent=1 // pred_region
      _
    $region97: #{conv_vae_forward.1} parent=1 // pred_fallthru
      _
    // Predicated region
    $region98: #{conv_vae_forward.1} parent=1 // pred_check
      _
    $region99: #{conv_vae_forward.1} parent=1 // pred_check_branch
      %1550 = sbr.rel (0) target = $region101
    $region100: #{conv_vae_forward.1} parent=1 // pred_region
      %1551 = dma.done [#allocation15], 16
    $region101: #{conv_vae_forward.1} parent=1 // pred_fallthru
      _
    // Predicated region
    $region102: #{conv_vae_forward.1} parent=1 // pred_check
      _
    $region103: #{conv_vae_forward.1} parent=1 // pred_check_branch
      %1553 = sbr.rel (0) target = $region105
    $region104: #{conv_vae_forward.1} parent=1 // pred_region
      %1554 = dma.done [#allocation15], 16
    $region105: #{conv_vae_forward.1} parent=1 // pred_fallthru
      _
    %1555 = vsyncpa [#allocation3], 1
    %1556 = vsyncpa [#allocation6], 1
    %1557 = vsyncpa [#allocation9], 1
    %1558 = vsyncpa [#allocation4], 1
    %1559 = vsyncpa [#allocation12], 1
    %1560 = vsyncpa [#allocation15], 1

</llo_original>
